<compile_context>
chip_gen: v6e
topology: v6e:2x2x1
jax: 0.10.0
libtpu: 0.0.40
codegen_flags: <defaults>
</compile_context>

<pallas_src>
import jax
import jax.numpy as jnp
from jax import lax
from jax.experimental import pallas as pl
from jax.experimental.pallas import tpu as pltpu

_HALO = 2  # halo in pooled (phase) positions == 4 original positions


def _make_kernel(Lh, TLh):
    """Builds the per-tile kernel. Lh = L//2 (pooled length), TLh = pooled tile."""
    W = TLh + 2 * _HALO  # window width in pooled positions

    def kernel(xe_ref, xo_ref,
               w1_ref, b1_ref, w2_ref, b2_ref, w3_ref, b3_ref,
               w4_ref, b4_ref, w5_ref, b5_ref, o_ref):
        t = pl.program_id(1)

        # Global pooled-position index of every lane of this window.
        lane = lax.broadcasted_iota(jnp.int32, (1, W), 1)
        gpos = t * TLh - _HALO + lane
        is_first = gpos == 0          # true sequence start -> replicate left
        is_last = gpos == (Lh - 1)    # true sequence end   -> replicate right

        x_e = xe_ref[0, 0].astype(jnp.float32)   # (C_in, W) even columns of x
        x_o = xo_ref[0, 0].astype(jnp.float32)   # (C_in, W) odd  columns of x

        relu = lambda v: jnp.maximum(v, 0.0)

        # Lane shifts by one pooled position.  Implemented as contiguous lane
        # slices + concat (guaranteed lowering for arbitrary, non-128-aligned
        # widths); the wrapped/duplicated edge column is never consumed — the
        # true boundary is handled by the is_first / is_last selects below.
        def shift_r(a):   # result[:, j] = a[:, j-1]
            return jnp.concatenate([a[:, :1], a[:, :-1]], axis=1)

        def shift_l(a):   # result[:, j] = a[:, j+1]
            return jnp.concatenate([a[:, 1:], a[:, -1:]], axis=1)

        def conv_k3(a_e, a_o, w_ref, b_ref):
            # Phase-split, fused-tap k=3 conv with replicate padding:
            #   out[2p]   = w0*a[2p-1] + w1*a[2p]   + w2*a[2p+1]
            #   out[2p+1] = w0*a[2p]   + w1*a[2p+1] + w2*a[2p+2]
            w = w_ref[...]                                    # (C_out, 3*C)
            b = b_ref[...].astype(jnp.float32)                # (C_out, 1)
            cd = w.dtype                                      # MXU dtype
            prev_o = jnp.where(is_first, a_e, shift_r(a_o))   # a[2p-1], clamped
            next_e = jnp.where(is_last, a_o, shift_l(a_e))    # a[2p+2], clamped
            stk_e = jnp.concatenate(
                [prev_o.astype(cd), a_e.astype(cd), a_o.astype(cd)], axis=0)
            stk_o = jnp.concatenate(
                [a_e.astype(cd), a_o.astype(cd), next_e.astype(cd)], axis=0)
            y_e = jnp.dot(w, stk_e, preferred_element_type=jnp.float32) + b
            y_o = jnp.dot(w, stk_o, preferred_element_type=jnp.float32) + b
            return y_e, y_o

        # conv1 (1x1) — residual branch.
        w1 = w1_ref[...]
        b1 = b1_ref[...].astype(jnp.float32)
        s_e = jnp.dot(w1, x_e.astype(w1.dtype),
                      preferred_element_type=jnp.float32) + b1
        s_o = jnp.dot(w1, x_o.astype(w1.dtype),
                      preferred_element_type=jnp.float32) + b1

        h_e, h_o = conv_k3(x_e, x_o, w2_ref, b2_ref)
        h_e, h_o = relu(h_e), relu(h_o)
        h_e, h_o = conv_k3(h_e, h_o, w3_ref, b3_ref)
        h_e, h_o = relu(h_e), relu(h_o)
        h_e, h_o = conv_k3(h_e, h_o, w4_ref, b4_ref)
        h_e, h_o = relu(h_e), relu(h_o)
        y_e, y_o = conv_k3(h_e, h_o, w5_ref, b5_ref)
        y_e = relu(y_e + s_e)
        y_o = relu(y_o + s_o)

        # MaxPool1d(2, 2) == element-wise max of the two phases; keep the
        # TLh center lanes (drop the halo).  Lane-dense store.
        pooled = jnp.maximum(y_e, y_o)[:, _HALO:_HALO + TLh]   # (C_out, TLh)
        o_ref[0] = pooled.astype(o_ref.dtype)

    return kernel


def residual_block_2(x_ncl, params, *, mxu_dtype=jnp.bfloat16, tile_lh=512):
    """Forward pass of ResudualBlock_2.

    x_ncl: (B, C_in, L) float32 (PyTorch NCL).  Returns (B, C_out, L//2).
    mxu_dtype: dtype of the MXU operands (weights / input windows).
    tile_lh:   L-tile size in pooled positions (multiple of 128 when tiling).
    """
    B, C_in, L = x_ncl.shape
    assert L % 2 == 0, "MaxPool1d(2,2) path assumes even L"
    C_out = params["w1"].shape[0]
    Lh = L // 2

    if Lh <= tile_lh:
        TLh, nT = Lh, 1
    else:
        assert tile_lh % 128 == 0, "tiled output blocks must be lane aligned"
        TLh = tile_lh
        nT = -(-Lh // TLh)
    W = TLh + 2 * _HALO

    # ---- wrapper preprocessing (one pass over x, no C/L transpose):
    # phase split (even/odd columns), replicate-halo windows for the L tiling,
    # and the MXU-dtype cast (bf16 halves kernel input HBM traffic).
    x_pair = x_ncl.reshape(B, C_in, Lh, 2)

    def windows(xp):                                    # xp: (B, C_in, Lh)
        pad_r = nT * TLh + _HALO - Lh
        xp = jnp.pad(xp, ((0, 0), (0, 0), (_HALO, pad_r)))
        tiles = [xp[:, :, t * TLh: t * TLh + W] for t in range(nT)]
        return jnp.stack(tiles, axis=1).astype(mxu_dtype)  # (B, nT, C_in, W)

    xe_win = windows(x_pair[..., 0])
    xo_win = windows(x_pair[..., 1])

    # ---- weights: fuse the 3 taps of each k=3 conv into one (C_out, 3*C)
    # matrix (one MXU issue per conv per phase); biases stay f32.
    def fuse(w):                                        # (C_out, C, 3)
        return jnp.concatenate([w[:, :, 0], w[:, :, 1], w[:, :, 2]],
                               axis=1).astype(mxu_dtype)

    w1 = params["w1"][:, :, 0].astype(mxu_dtype)        # (C_out, C_in)
    w2, w3, w4, w5 = (fuse(params[k]) for k in ("w2", "w3", "w4", "w5"))
    b1, b2, b3, b4, b5 = (params[k].reshape(C_out, 1).astype(jnp.float32)
                          for k in ("b1", "b2", "b3", "b4", "b5"))

    const = lambda a: pl.BlockSpec(a.shape, lambda b, t: (0,) * a.ndim)
    win_spec = pl.BlockSpec((1, 1, C_in, W), lambda b, t: (b, t, 0, 0))

    out = pl.pallas_call(
        _make_kernel(Lh, TLh),
        out_shape=jax.ShapeDtypeStruct((B, C_out, nT * TLh), x_ncl.dtype),
        grid_spec=pltpu.PrefetchScalarGridSpec(
            num_scalar_prefetch=0,
            grid=(B, nT),
            in_specs=[win_spec, win_spec,
                      const(w1), const(b1), const(w2), const(b2),
                      const(w3), const(b3), const(w4), const(b4),
                      const(w5), const(b5)],
            out_specs=pl.BlockSpec((1, C_out, TLh), lambda b, t: (b, 0, t)),
        ),
        compiler_params=pltpu.CompilerParams(
            dimension_semantics=("parallel", "parallel"),
            # Per-step footprint ~ O(C_out * (TLh+4)) f32 activations plus
            # double-buffered in/out blocks: a few hundred KiB, far below the
            # 64 MiB physical VMEM of v7x (128 MiB v5e/v6e).
            vmem_limit_bytes=32 * 1024 * 1024,
        ),
    )(xe_win, xo_win, w1, b1, w2, b2, w3, b3, w4, b4, w5, b5)

    return out[:, :, :Lh]


def _reference(x_ncl, params):
    """Pure-JAX reference of the PyTorch forward, for correctness checking."""
    def conv1d(x, w, b, pad):
        # x: (B, C_in, L); w: (C_out, C_in, K)
        if pad > 0:
            x = jnp.pad(x, ((0, 0), (0, 0), (pad, pad)), mode="edge")  # replicate
        y = lax.conv_general_dilated(
            x, w, window_strides=(1,), padding="VALID",
            dimension_numbers=("NCH", "OIH", "NCH"))
        return y + b[None, :, None]

    relu = jax.nn.relu
    s = conv1d(x_ncl, params["w1"], params["b1"], 0)
    h = relu(conv1d(x_ncl, params["w2"], params["b2"], 1))
    h = relu(conv1d(h, params["w3"], params["b3"], 1))
    h = relu(conv1d(h, params["w4"], params["b4"], 1))
    h = conv1d(h, params["w5"], params["b5"], 1) + s
    h = relu(h)
    B, C, L = h.shape
    return jnp.max(h.reshape(B, C, L // 2, 2), axis=-1)


if __name__ == "__main__":
    B, C_in, C_out, L = 2, 4, 8, 16

    key = jax.random.PRNGKey(0)
    keys = jax.random.split(key, 12)
    init = lambda k, shape: (0.1 * jax.random.normal(k, shape)).astype(jnp.float32)

    params = {
        "w1": init(keys[0], (C_out, C_in, 1)),  "b1": init(keys[1], (C_out,)),
        "w2": init(keys[2], (C_out, C_in, 3)),  "b2": init(keys[3], (C_out,)),
        "w3": init(keys[4], (C_out, C_out, 3)), "b3": init(keys[5], (C_out,)),
        "w4": init(keys[6], (C_out, C_out, 3)), "b4": init(keys[7], (C_out,)),
        "w5": init(keys[8], (C_out, C_out, 3)), "b5": init(keys[9], (C_out,)),
    }

    # --- test 1: exact-precision path (f32 MXU operands), single L tile.
    x = init(keys[10], (B, C_in, L))                 # NCL, like the PyTorch module
    out_f32 = jax.block_until_ready(
        residual_block_2(x, params, mxu_dtype=jnp.float32))
    ref = jax.block_until_ready(_reference(x, params))
    assert out_f32.shape == (B, C_out, L // 2), out_f32.shape
    assert jnp.allclose(out_f32, ref, atol=1e-5, rtol=1e-5), \
        float(jnp.abs(out_f32 - ref).max())

    # --- test 2: bf16-MXU path with L tiling (3 tiles of 128 pooled positions
    # + replicate halo), looser tolerance per bf16 operand rounding.
    L2 = 640
    x2 = init(keys[11], (B, C_in, L2))
    out_bf16 = jax.block_until_ready(
        residual_block_2(x2, params, mxu_dtype=jnp.bfloat16, tile_lh=128))
    ref2 = jax.block_until_ready(_reference(x2, params))
    assert out_bf16.shape == (B, C_out, L2 // 2), out_bf16.shape
    assert jnp.allclose(out_bf16, ref2, atol=1e-2, rtol=1e-2), \
        float(jnp.abs(out_bf16 - ref2).max())

    print("KERNEL_OK")
</pallas_src>

<mosaic_0001>
module attributes {stable_mosaic.version = 11 : i64} {
  func.func @kernel(%arg0: i32, %arg1: i32, %arg2: memref<1x1x4x12xf32, #tpu.memory_space<vmem>>, %arg3: memref<1x1x4x12xf32, #tpu.memory_space<vmem>>, %arg4: memref<8x4xf32, #tpu.memory_space<vmem>>, %arg5: memref<8x1xf32, #tpu.memory_space<vmem>>, %arg6: memref<8x12xf32, #tpu.memory_space<vmem>>, %arg7: memref<8x1xf32, #tpu.memory_space<vmem>>, %arg8: memref<8x24xf32, #tpu.memory_space<vmem>>, %arg9: memref<8x1xf32, #tpu.memory_space<vmem>>, %arg10: memref<8x24xf32, #tpu.memory_space<vmem>>, %arg11: memref<8x1xf32, #tpu.memory_space<vmem>>, %arg12: memref<8x24xf32, #tpu.memory_space<vmem>>, %arg13: memref<8x1xf32, #tpu.memory_space<vmem>>, %arg14: memref<1x8x8xf32, #tpu.memory_space<vmem>>) attributes {dimension_semantics = [#tpu.dimension_semantics<parallel>, #tpu.dimension_semantics<parallel>], iteration_bounds = array<i64: 2, 1>, scalar_prefetch = 0 : i64, scratch_operands = 0 : i64, tpu.core_type = #tpu.core_type<tc>, window_params = [{transform_indices = @transform_0, window_bounds = array<i64: 1, 1, 4, 12>}, {transform_indices = @transform_1, window_bounds = array<i64: 1, 1, 4, 12>}, {pipeline_mode = #tpu.pipeline_mode<synchronous>, transform_indices = @transform_2, window_bounds = array<i64: 8, 4>}, {pipeline_mode = #tpu.pipeline_mode<synchronous>, transform_indices = @transform_3, window_bounds = array<i64: 8, 1>}, {pipeline_mode = #tpu.pipeline_mode<synchronous>, transform_indices = @transform_4, window_bounds = array<i64: 8, 12>}, {pipeline_mode = #tpu.pipeline_mode<synchronous>, transform_indices = @transform_5, window_bounds = array<i64: 8, 1>}, {pipeline_mode = #tpu.pipeline_mode<synchronous>, transform_indices = @transform_6, window_bounds = array<i64: 8, 24>}, {pipeline_mode = #tpu.pipeline_mode<synchronous>, transform_indices = @transform_7, window_bounds = array<i64: 8, 1>}, {pipeline_mode = #tpu.pipeline_mode<synchronous>, transform_indices = @transform_8, window_bounds = array<i64: 8, 24>}, {pipeline_mode = #tpu.pipeline_mode<synchronous>, transform_indices = @transform_9, window_bounds = array<i64: 8, 1>}, {pipeline_mode = #tpu.pipeline_mode<synchronous>, transform_indices = @transform_10, window_bounds = array<i64: 8, 24>}, {pipeline_mode = #tpu.pipeline_mode<synchronous>, transform_indices = @transform_11, window_bounds = array<i64: 8, 1>}, {transform_indices = @transform_12, window_bounds = array<i64: 1, 8, 8>}]} {
    %0 = tpu.iota {dimensions = array<i32: 1>} : vector<1x12xi32>
    %c8_i32 = arith.constant 8 : i32
    %1 = arith.muli %arg1, %c8_i32 : i32
    %c2_i32 = arith.constant 2 : i32
    %2 = arith.subi %1, %c2_i32 : i32
    %3 = vector.broadcast %2 : i32 to vector<1x12xi32>
    %4 = arith.addi %3, %0 : vector<1x12xi32>
    %c0_i32 = arith.constant 0 : i32
    %5 = vector.broadcast %c0_i32 : i32 to vector<1x12xi32>
    %6 = arith.cmpi eq, %4, %5 : vector<1x12xi32>
    %c7_i32 = arith.constant 7 : i32
    %7 = vector.broadcast %c7_i32 : i32 to vector<1x12xi32>
    %8 = arith.cmpi eq, %4, %7 : vector<1x12xi32>
    %c0 = arith.constant 0 : index
    %c0_0 = arith.constant 0 : index
    %c0_1 = arith.constant 0 : index
    %c0_2 = arith.constant 0 : index
    %9 = vector.load %arg2[%c0, %c0_0, %c0_1, %c0_2] : memref<1x1x4x12xf32, #tpu.memory_space<vmem>>, vector<1x1x4x12xf32>
    %10 = vector.shape_cast %9 : vector<1x1x4x12xf32> to vector<4x12xf32>
    %c0_3 = arith.constant 0 : index
    %c0_4 = arith.constant 0 : index
    %c0_5 = arith.constant 0 : index
    %c0_6 = arith.constant 0 : index
    %11 = vector.load %arg3[%c0_3, %c0_4, %c0_5, %c0_6] : memref<1x1x4x12xf32, #tpu.memory_space<vmem>>, vector<1x1x4x12xf32>
    %12 = vector.shape_cast %11 : vector<1x1x4x12xf32> to vector<4x12xf32>
    %c0_7 = arith.constant 0 : index
    %c0_8 = arith.constant 0 : index
    %13 = vector.load %arg4[%c0_7, %c0_8] : memref<8x4xf32, #tpu.memory_space<vmem>>, vector<8x4xf32>
    %c0_9 = arith.constant 0 : index
    %c0_10 = arith.constant 0 : index
    %14 = vector.load %arg5[%c0_9, %c0_10] : memref<8x1xf32, #tpu.memory_space<vmem>>, vector<8x1xf32>
    %cst = arith.constant dense<0.000000e+00> : vector<8x12xf32>
    %15 = tpu.matmul %13, %10, %cst {dimension_numbers = #tpu.dot_dimension_numbers<[1], [0], [0], [1], [0, 0, 1, 1], [], []>} : vector<8x4xf32>, vector<4x12xf32>, vector<8x12xf32> -> vector<8x12xf32>
    %16 = vector.broadcast %14 : vector<8x1xf32> to vector<8x12xf32>
    %17 = arith.addf %15, %16 : vector<8x12xf32>
    %cst_11 = arith.constant dense<0.000000e+00> : vector<8x12xf32>
    %18 = tpu.matmul %13, %12, %cst_11 {dimension_numbers = #tpu.dot_dimension_numbers<[1], [0], [0], [1], [0, 0, 1, 1], [], []>} : vector<8x4xf32>, vector<4x12xf32>, vector<8x12xf32> -> vector<8x12xf32>
    %19 = vector.broadcast %14 : vector<8x1xf32> to vector<8x12xf32>
    %20 = arith.addf %18, %19 : vector<8x12xf32>
    %c0_12 = arith.constant 0 : index
    %c0_13 = arith.constant 0 : index
    %21 = vector.load %arg6[%c0_12, %c0_13] : memref<8x12xf32, #tpu.memory_space<vmem>>, vector<8x12xf32>
    %c0_14 = arith.constant 0 : index
    %c0_15 = arith.constant 0 : index
    %22 = vector.load %arg7[%c0_14, %c0_15] : memref<8x1xf32, #tpu.memory_space<vmem>>, vector<8x1xf32>
    %23 = vector.extract_strided_slice %12 {offsets = [0, 0], sizes = [4, 1], strides = [1, 1]} : vector<4x12xf32> to vector<4x1xf32>
    %24 = vector.extract_strided_slice %12 {offsets = [0, 0], sizes = [4, 11], strides = [1, 1]} : vector<4x12xf32> to vector<4x11xf32>
    %25 = tpu.concatenate %23, %24 in 1 : vector<4x1xf32>, vector<4x11xf32> -> vector<4x12xf32>
    %26 = vector.shape_cast %6 : vector<1x12xi1> to vector<1x12xi1>
    %27 = vector.broadcast %26 : vector<1x12xi1> to vector<4x12xi1>
    %28 = arith.select %27, %10, %25 : vector<4x12xi1>, vector<4x12xf32>
    %29 = vector.extract_strided_slice %10 {offsets = [0, 1], sizes = [4, 11], strides = [1, 1]} : vector<4x12xf32> to vector<4x11xf32>
    %30 = vector.extract_strided_slice %10 {offsets = [0, 11], sizes = [4, 1], strides = [1, 1]} : vector<4x12xf32> to vector<4x1xf32>
    %31 = tpu.concatenate %29, %30 in 1 : vector<4x11xf32>, vector<4x1xf32> -> vector<4x12xf32>
    %32 = vector.shape_cast %8 : vector<1x12xi1> to vector<1x12xi1>
    %33 = vector.broadcast %32 : vector<1x12xi1> to vector<4x12xi1>
    %34 = arith.select %33, %12, %31 : vector<4x12xi1>, vector<4x12xf32>
    %35 = tpu.concatenate %28, %10, %12 in 0 : vector<4x12xf32>, vector<4x12xf32>, vector<4x12xf32> -> vector<12x12xf32>
    %36 = tpu.concatenate %10, %12, %34 in 0 : vector<4x12xf32>, vector<4x12xf32>, vector<4x12xf32> -> vector<12x12xf32>
    %cst_16 = arith.constant dense<0.000000e+00> : vector<8x12xf32>
    %37 = tpu.matmul %21, %35, %cst_16 {dimension_numbers = #tpu.dot_dimension_numbers<[1], [0], [0], [1], [0, 0, 1, 1], [], []>} : vector<8x12xf32>, vector<12x12xf32>, vector<8x12xf32> -> vector<8x12xf32>
    %38 = vector.broadcast %22 : vector<8x1xf32> to vector<8x12xf32>
    %39 = arith.addf %37, %38 : vector<8x12xf32>
    %cst_17 = arith.constant dense<0.000000e+00> : vector<8x12xf32>
    %40 = tpu.matmul %21, %36, %cst_17 {dimension_numbers = #tpu.dot_dimension_numbers<[1], [0], [0], [1], [0, 0, 1, 1], [], []>} : vector<8x12xf32>, vector<12x12xf32>, vector<8x12xf32> -> vector<8x12xf32>
    %41 = vector.broadcast %22 : vector<8x1xf32> to vector<8x12xf32>
    %42 = arith.addf %40, %41 : vector<8x12xf32>
    %cst_18 = arith.constant 0.000000e+00 : f32
    %43 = vector.broadcast %cst_18 : f32 to vector<8x12xf32>
    %44 = arith.maximumf %39, %43 : vector<8x12xf32>
    %cst_19 = arith.constant 0.000000e+00 : f32
    %45 = vector.broadcast %cst_19 : f32 to vector<8x12xf32>
    %46 = arith.maximumf %42, %45 : vector<8x12xf32>
    %c0_20 = arith.constant 0 : index
    %c0_21 = arith.constant 0 : index
    %47 = vector.load %arg8[%c0_20, %c0_21] : memref<8x24xf32, #tpu.memory_space<vmem>>, vector<8x24xf32>
    %c0_22 = arith.constant 0 : index
    %c0_23 = arith.constant 0 : index
    %48 = vector.load %arg9[%c0_22, %c0_23] : memref<8x1xf32, #tpu.memory_space<vmem>>, vector<8x1xf32>
    %49 = vector.extract_strided_slice %46 {offsets = [0, 0], sizes = [8, 1], strides = [1, 1]} : vector<8x12xf32> to vector<8x1xf32>
    %50 = vector.extract_strided_slice %46 {offsets = [0, 0], sizes = [8, 11], strides = [1, 1]} : vector<8x12xf32> to vector<8x11xf32>
    %51 = tpu.concatenate %49, %50 in 1 : vector<8x1xf32>, vector<8x11xf32> -> vector<8x12xf32>
    %52 = vector.shape_cast %6 : vector<1x12xi1> to vector<1x12xi1>
    %53 = vector.broadcast %52 : vector<1x12xi1> to vector<8x12xi1>
    %54 = arith.select %53, %44, %51 : vector<8x12xi1>, vector<8x12xf32>
    %55 = vector.extract_strided_slice %44 {offsets = [0, 1], sizes = [8, 11], strides = [1, 1]} : vector<8x12xf32> to vector<8x11xf32>
    %56 = vector.extract_strided_slice %44 {offsets = [0, 11], sizes = [8, 1], strides = [1, 1]} : vector<8x12xf32> to vector<8x1xf32>
    %57 = tpu.concatenate %55, %56 in 1 : vector<8x11xf32>, vector<8x1xf32> -> vector<8x12xf32>
    %58 = vector.shape_cast %8 : vector<1x12xi1> to vector<1x12xi1>
    %59 = vector.broadcast %58 : vector<1x12xi1> to vector<8x12xi1>
    %60 = arith.select %59, %46, %57 : vector<8x12xi1>, vector<8x12xf32>
    %61 = tpu.concatenate %54, %44, %46 in 0 : vector<8x12xf32>, vector<8x12xf32>, vector<8x12xf32> -> vector<24x12xf32>
    %62 = tpu.concatenate %44, %46, %60 in 0 : vector<8x12xf32>, vector<8x12xf32>, vector<8x12xf32> -> vector<24x12xf32>
    %cst_24 = arith.constant dense<0.000000e+00> : vector<8x12xf32>
    %63 = tpu.matmul %47, %61, %cst_24 {dimension_numbers = #tpu.dot_dimension_numbers<[1], [0], [0], [1], [0, 0, 1, 1], [], []>} : vector<8x24xf32>, vector<24x12xf32>, vector<8x12xf32> -> vector<8x12xf32>
    %64 = vector.broadcast %48 : vector<8x1xf32> to vector<8x12xf32>
    %65 = arith.addf %63, %64 : vector<8x12xf32>
    %cst_25 = arith.constant dense<0.000000e+00> : vector<8x12xf32>
    %66 = tpu.matmul %47, %62, %cst_25 {dimension_numbers = #tpu.dot_dimension_numbers<[1], [0], [0], [1], [0, 0, 1, 1], [], []>} : vector<8x24xf32>, vector<24x12xf32>, vector<8x12xf32> -> vector<8x12xf32>
    %67 = vector.broadcast %48 : vector<8x1xf32> to vector<8x12xf32>
    %68 = arith.addf %66, %67 : vector<8x12xf32>
    %cst_26 = arith.constant 0.000000e+00 : f32
    %69 = vector.broadcast %cst_26 : f32 to vector<8x12xf32>
    %70 = arith.maximumf %65, %69 : vector<8x12xf32>
    %cst_27 = arith.constant 0.000000e+00 : f32
    %71 = vector.broadcast %cst_27 : f32 to vector<8x12xf32>
    %72 = arith.maximumf %68, %71 : vector<8x12xf32>
    %c0_28 = arith.constant 0 : index
    %c0_29 = arith.constant 0 : index
    %73 = vector.load %arg10[%c0_28, %c0_29] : memref<8x24xf32, #tpu.memory_space<vmem>>, vector<8x24xf32>
    %c0_30 = arith.constant 0 : index
    %c0_31 = arith.constant 0 : index
    %74 = vector.load %arg11[%c0_30, %c0_31] : memref<8x1xf32, #tpu.memory_space<vmem>>, vector<8x1xf32>
    %75 = vector.extract_strided_slice %72 {offsets = [0, 0], sizes = [8, 1], strides = [1, 1]} : vector<8x12xf32> to vector<8x1xf32>
    %76 = vector.extract_strided_slice %72 {offsets = [0, 0], sizes = [8, 11], strides = [1, 1]} : vector<8x12xf32> to vector<8x11xf32>
    %77 = tpu.concatenate %75, %76 in 1 : vector<8x1xf32>, vector<8x11xf32> -> vector<8x12xf32>
    %78 = vector.shape_cast %6 : vector<1x12xi1> to vector<1x12xi1>
    %79 = vector.broadcast %78 : vector<1x12xi1> to vector<8x12xi1>
    %80 = arith.select %79, %70, %77 : vector<8x12xi1>, vector<8x12xf32>
    %81 = vector.extract_strided_slice %70 {offsets = [0, 1], sizes = [8, 11], strides = [1, 1]} : vector<8x12xf32> to vector<8x11xf32>
    %82 = vector.extract_strided_slice %70 {offsets = [0, 11], sizes = [8, 1], strides = [1, 1]} : vector<8x12xf32> to vector<8x1xf32>
    %83 = tpu.concatenate %81, %82 in 1 : vector<8x11xf32>, vector<8x1xf32> -> vector<8x12xf32>
    %84 = vector.shape_cast %8 : vector<1x12xi1> to vector<1x12xi1>
    %85 = vector.broadcast %84 : vector<1x12xi1> to vector<8x12xi1>
    %86 = arith.select %85, %72, %83 : vector<8x12xi1>, vector<8x12xf32>
    %87 = tpu.concatenate %80, %70, %72 in 0 : vector<8x12xf32>, vector<8x12xf32>, vector<8x12xf32> -> vector<24x12xf32>
    %88 = tpu.concatenate %70, %72, %86 in 0 : vector<8x12xf32>, vector<8x12xf32>, vector<8x12xf32> -> vector<24x12xf32>
    %cst_32 = arith.constant dense<0.000000e+00> : vector<8x12xf32>
    %89 = tpu.matmul %73, %87, %cst_32 {dimension_numbers = #tpu.dot_dimension_numbers<[1], [0], [0], [1], [0, 0, 1, 1], [], []>} : vector<8x24xf32>, vector<24x12xf32>, vector<8x12xf32> -> vector<8x12xf32>
    %90 = vector.broadcast %74 : vector<8x1xf32> to vector<8x12xf32>
    %91 = arith.addf %89, %90 : vector<8x12xf32>
    %cst_33 = arith.constant dense<0.000000e+00> : vector<8x12xf32>
    %92 = tpu.matmul %73, %88, %cst_33 {dimension_numbers = #tpu.dot_dimension_numbers<[1], [0], [0], [1], [0, 0, 1, 1], [], []>} : vector<8x24xf32>, vector<24x12xf32>, vector<8x12xf32> -> vector<8x12xf32>
    %93 = vector.broadcast %74 : vector<8x1xf32> to vector<8x12xf32>
    %94 = arith.addf %92, %93 : vector<8x12xf32>
    %cst_34 = arith.constant 0.000000e+00 : f32
    %95 = vector.broadcast %cst_34 : f32 to vector<8x12xf32>
    %96 = arith.maximumf %91, %95 : vector<8x12xf32>
    %cst_35 = arith.constant 0.000000e+00 : f32
    %97 = vector.broadcast %cst_35 : f32 to vector<8x12xf32>
    %98 = arith.maximumf %94, %97 : vector<8x12xf32>
    %c0_36 = arith.constant 0 : index
    %c0_37 = arith.constant 0 : index
    %99 = vector.load %arg12[%c0_36, %c0_37] : memref<8x24xf32, #tpu.memory_space<vmem>>, vector<8x24xf32>
    %c0_38 = arith.constant 0 : index
    %c0_39 = arith.constant 0 : index
    %100 = vector.load %arg13[%c0_38, %c0_39] : memref<8x1xf32, #tpu.memory_space<vmem>>, vector<8x1xf32>
    %101 = vector.extract_strided_slice %98 {offsets = [0, 0], sizes = [8, 1], strides = [1, 1]} : vector<8x12xf32> to vector<8x1xf32>
    %102 = vector.extract_strided_slice %98 {offsets = [0, 0], sizes = [8, 11], strides = [1, 1]} : vector<8x12xf32> to vector<8x11xf32>
    %103 = tpu.concatenate %101, %102 in 1 : vector<8x1xf32>, vector<8x11xf32> -> vector<8x12xf32>
    %104 = vector.shape_cast %6 : vector<1x12xi1> to vector<1x12xi1>
    %105 = vector.broadcast %104 : vector<1x12xi1> to vector<8x12xi1>
    %106 = arith.select %105, %96, %103 : vector<8x12xi1>, vector<8x12xf32>
    %107 = vector.extract_strided_slice %96 {offsets = [0, 1], sizes = [8, 11], strides = [1, 1]} : vector<8x12xf32> to vector<8x11xf32>
    %108 = vector.extract_strided_slice %96 {offsets = [0, 11], sizes = [8, 1], strides = [1, 1]} : vector<8x12xf32> to vector<8x1xf32>
    %109 = tpu.concatenate %107, %108 in 1 : vector<8x11xf32>, vector<8x1xf32> -> vector<8x12xf32>
    %110 = vector.shape_cast %8 : vector<1x12xi1> to vector<1x12xi1>
    %111 = vector.broadcast %110 : vector<1x12xi1> to vector<8x12xi1>
    %112 = arith.select %111, %98, %109 : vector<8x12xi1>, vector<8x12xf32>
    %113 = tpu.concatenate %106, %96, %98 in 0 : vector<8x12xf32>, vector<8x12xf32>, vector<8x12xf32> -> vector<24x12xf32>
    %114 = tpu.concatenate %96, %98, %112 in 0 : vector<8x12xf32>, vector<8x12xf32>, vector<8x12xf32> -> vector<24x12xf32>
    %cst_40 = arith.constant dense<0.000000e+00> : vector<8x12xf32>
    %115 = tpu.matmul %99, %113, %cst_40 {dimension_numbers = #tpu.dot_dimension_numbers<[1], [0], [0], [1], [0, 0, 1, 1], [], []>} : vector<8x24xf32>, vector<24x12xf32>, vector<8x12xf32> -> vector<8x12xf32>
    %116 = vector.broadcast %100 : vector<8x1xf32> to vector<8x12xf32>
    %117 = arith.addf %115, %116 : vector<8x12xf32>
    %cst_41 = arith.constant dense<0.000000e+00> : vector<8x12xf32>
    %118 = tpu.matmul %99, %114, %cst_41 {dimension_numbers = #tpu.dot_dimension_numbers<[1], [0], [0], [1], [0, 0, 1, 1], [], []>} : vector<8x24xf32>, vector<24x12xf32>, vector<8x12xf32> -> vector<8x12xf32>
    %119 = vector.broadcast %100 : vector<8x1xf32> to vector<8x12xf32>
    %120 = arith.addf %118, %119 : vector<8x12xf32>
    %121 = arith.addf %117, %17 : vector<8x12xf32>
    %cst_42 = arith.constant 0.000000e+00 : f32
    %122 = vector.broadcast %cst_42 : f32 to vector<8x12xf32>
    %123 = arith.maximumf %121, %122 : vector<8x12xf32>
    %124 = arith.addf %120, %20 : vector<8x12xf32>
    %cst_43 = arith.constant 0.000000e+00 : f32
    %125 = vector.broadcast %cst_43 : f32 to vector<8x12xf32>
    %126 = arith.maximumf %124, %125 : vector<8x12xf32>
    %127 = arith.maximumf %123, %126 : vector<8x12xf32>
    %128 = vector.extract_strided_slice %127 {offsets = [0, 2], sizes = [8, 8], strides = [1, 1]} : vector<8x12xf32> to vector<8x8xf32>
    %c0_44 = arith.constant 0 : index
    %c0_45 = arith.constant 0 : index
    %c0_46 = arith.constant 0 : index
    %129 = vector.load %arg14[%c0_44, %c0_45, %c0_46] : memref<1x8x8xf32, #tpu.memory_space<vmem>>, vector<1x8x8xf32>
    %130 = vector.shape_cast %129 : vector<1x8x8xf32> to vector<8x8xf32>
    %131 = vector.shape_cast %128 : vector<8x8xf32> to vector<1x8x8xf32>
    tpu.vector_store %arg14[%c0_44, %c0_45, %c0_46], %131 {strides = array<i32>} : memref<1x8x8xf32, #tpu.memory_space<vmem>>, vector<1x8x8xf32>,
    return
  }
  func.func @transform_0(%arg0: i32, %arg1: i32) -> (i32, i32, i32, i32) {
    %c0_i32 = arith.constant 0 : i32
    %c0_i32_0 = arith.constant 0 : i32
    %c0_i32_1 = arith.constant 0 : i32
    return %arg0, %arg1, %c0_i32, %c0_i32_0 : i32, i32, i32, i32
  }
  func.func @transform_1(%arg0: i32, %arg1: i32) -> (i32, i32, i32, i32) {
    %c0_i32 = arith.constant 0 : i32
    %c0_i32_0 = arith.constant 0 : i32
    %c0_i32_1 = arith.constant 0 : i32
    return %arg0, %arg1, %c0_i32, %c0_i32_0 : i32, i32, i32, i32
  }
  func.func @transform_2(%arg0: i32, %arg1: i32) -> (i32, i32) {
    %c0_i32 = arith.constant 0 : i32
    %c0_i32_0 = arith.constant 0 : i32
    %c0_i32_1 = arith.constant 0 : i32
    return %c0_i32, %c0_i32_0 : i32, i32
  }
  func.func @transform_3(%arg0: i32, %arg1: i32) -> (i32, i32) {
    %c0_i32 = arith.constant 0 : i32
    %c0_i32_0 = arith.constant 0 : i32
    %c0_i32_1 = arith.constant 0 : i32
    return %c0_i32, %c0_i32_0 : i32, i32
  }
  func.func @transform_4(%arg0: i32, %arg1: i32) -> (i32, i32) {
    %c0_i32 = arith.constant 0 : i32
    %c0_i32_0 = arith.constant 0 : i32
    %c0_i32_1 = arith.constant 0 : i32
    return %c0_i32, %c0_i32_0 : i32, i32
  }
  func.func @transform_5(%arg0: i32, %arg1: i32) -> (i32, i32) {
    %c0_i32 = arith.constant 0 : i32
    %c0_i32_0 = arith.constant 0 : i32
    %c0_i32_1 = arith.constant 0 : i32
    return %c0_i32, %c0_i32_0 : i32, i32
  }
  func.func @transform_6(%arg0: i32, %arg1: i32) -> (i32, i32) {
    %c0_i32 = arith.constant 0 : i32
    %c0_i32_0 = arith.constant 0 : i32
    %c0_i32_1 = arith.constant 0 : i32
    return %c0_i32, %c0_i32_0 : i32, i32
  }
  func.func @transform_7(%arg0: i32, %arg1: i32) -> (i32, i32) {
    %c0_i32 = arith.constant 0 : i32
    %c0_i32_0 = arith.constant 0 : i32
    %c0_i32_1 = arith.constant 0 : i32
    return %c0_i32, %c0_i32_0 : i32, i32
  }
  func.func @transform_8(%arg0: i32, %arg1: i32) -> (i32, i32) {
    %c0_i32 = arith.constant 0 : i32
    %c0_i32_0 = arith.constant 0 : i32
    %c0_i32_1 = arith.constant 0 : i32
    return %c0_i32, %c0_i32_0 : i32, i32
  }
  func.func @transform_9(%arg0: i32, %arg1: i32) -> (i32, i32) {
    %c0_i32 = arith.constant 0 : i32
    %c0_i32_0 = arith.constant 0 : i32
    %c0_i32_1 = arith.constant 0 : i32
    return %c0_i32, %c0_i32_0 : i32, i32
  }
  func.func @transform_10(%arg0: i32, %arg1: i32) -> (i32, i32) {
    %c0_i32 = arith.constant 0 : i32
    %c0_i32_0 = arith.constant 0 : i32
    %c0_i32_1 = arith.constant 0 : i32
    return %c0_i32, %c0_i32_0 : i32, i32
  }
  func.func @transform_11(%arg0: i32, %arg1: i32) -> (i32, i32) {
    %c0_i32 = arith.constant 0 : i32
    %c0_i32_0 = arith.constant 0 : i32
    %c0_i32_1 = arith.constant 0 : i32
    return %c0_i32, %c0_i32_0 : i32, i32
  }
  func.func @transform_12(%arg0: i32, %arg1: i32) -> (i32, i32, i32) {
    %c0_i32 = arith.constant 0 : i32
    %c0_i32_0 = arith.constant 0 : i32
    return %arg0, %c0_i32, %arg1 : i32, i32, i32
  }
}

</mosaic_0001>

<llo_original>
// kernel: tpu_custom_call.1
$region0: #{tpu_custom_call.1}
  #allocation0 [shape = 'u32[]', space=smem, size = 0x4, offset = 0x4, fixed_abs, tag = 'smem constant byte address 0x4 - core index']
  #allocation1 [shape = 'u32[144,128]{1,0:T(1,128)}', space=vmem, size = 0x12000, scoped, tag = 'internal scratch']
  %s0 = inlined_call_operand.vmem [shape: f32[2,1,4,12], index: 0, kind: input, shape index: {}]
  %s1 = inlined_call_operand.vmem [shape: f32[2,1,4,12], index: 1, kind: input, shape index: {}]
  %s2 = inlined_call_operand.vmem [shape: f32[8,4], index: 2, kind: input, shape index: {}]
  %s3 = inlined_call_operand.vmem [shape: f32[8,1], index: 3, kind: input, shape index: {}]
  %s4 = inlined_call_operand.vmem [shape: f32[8,12], index: 4, kind: input, shape index: {}]
  %s5 = inlined_call_operand.vmem [shape: f32[8,1], index: 5, kind: input, shape index: {}]
  %s6 = inlined_call_operand.vmem [shape: f32[8,24], index: 6, kind: input, shape index: {}]
  %s7 = inlined_call_operand.vmem [shape: f32[8,1], index: 7, kind: input, shape index: {}]
  %s8 = inlined_call_operand.vmem [shape: f32[8,24], index: 8, kind: input, shape index: {}]
  %s9 = inlined_call_operand.vmem [shape: f32[8,1], index: 9, kind: input, shape index: {}]
  %s10 = inlined_call_operand.vmem [shape: f32[8,24], index: 10, kind: input, shape index: {}]
  %s11 = inlined_call_operand.vmem [shape: f32[8,1], index: 11, kind: input, shape index: {}]
  %s12 = inlined_call_operand.hbm [shape: f32[2,8,8], index: 12, kind: output, shape index: {}]
  %s13 = sld [smem:[#allocation0]]
  $region81: #{tpu_custom_call.1} parent=0
    _
  %s15 = ssub.s32 1, %s13
  %s16 = scalar_select 0, %s15, %s13
  $region1: #{tpu_custom_call.1} parent=0
    #allocation2 [shape = 'u8[8192]{0}', space=vmem, size = 0x2000, scoped, tag = 'output window, operand 0']
    #allocation3 [shape = 's32[2]{0}', space=sflag, size = 0x8, scoped, tag = 'scoped memory for tpu_custom_call.1']
    %17 = vsyncpa [#allocation3], 0
    %s18 = scalar_lea.sflag [#allocation3], 1
    %19 = vsyncpa %s18, 0
    loop: start=0, step=1, limit=4
    $region2: #{tpu_custom_call.1} parent=1 // loop_pre_header
      _
    $region3: #{tpu_custom_call.1} parent=1 // loop_header
      %s21 = sphi 0, %s25
      %p22 = scmp.ge.s32.totalorder %s21, 4
      %s28 = sphi 0, %s40
      %s29 = sphi 0, %s36
      %s30 = sphi 0, %s28
      %s31 = sphi 0, %s29
      %s32 = sphi 0, %s30
      %s33 = sphi 0, %s31
      %s45 = sphi 0, %s47
      %s48 = sphi 0, %s45
      %s49 = sphi 0, %s48
      %s65 = sphi 0, %s49
      %s73 = sphi 0, %s75
      %s76 = sphi 0, %s73
      %s77 = sphi 0, %s76
      %s93 = sphi 0, %s77
      %s97 = sphi 0, %s97
      %s99 = sphi 0, %s97
      %s100 = sphi 0, %s99
      %s114 = sphi 0, %s100
      %s118 = sphi 0, %s118
      %s120 = sphi 0, %s118
      %s121 = sphi 0, %s120
      %s135 = sphi 0, %s121
      %s139 = sphi 0, %s139
      %s141 = sphi 0, %s139
      %s142 = sphi 0, %s141
      %s156 = sphi 0, %s142
      %s160 = sphi 0, %s160
      %s162 = sphi 0, %s160
      %s163 = sphi 0, %s162
      %s177 = sphi 0, %s163
      %s181 = sphi 0, %s181
      %s183 = sphi 0, %s181
      %s184 = sphi 0, %s183
      %s198 = sphi 0, %s184
      %s202 = sphi 0, %s202
      %s204 = sphi 0, %s202
      %s205 = sphi 0, %s204
      %s219 = sphi 0, %s205
      %s223 = sphi 0, %s223
      %s225 = sphi 0, %s223
      %s226 = sphi 0, %s225
      %s240 = sphi 0, %s226
      %s244 = sphi 0, %s244
      %s246 = sphi 0, %s244
      %s247 = sphi 0, %s246
      %s261 = sphi 0, %s247
      %s265 = sphi 0, %s265
      %s267 = sphi 0, %s265
      %s268 = sphi 0, %s267
      %s282 = sphi 0, %s268
      %s286 = sphi 0, %s286
      %s288 = sphi 0, %s286
      %s289 = sphi 0, %s288
      %s303 = sphi 0, %s289
      %s311 = sphi 0, %s313
      %s314 = sphi 0, %s311
      %s315 = sphi 0, %s314
      %s331 = sphi 0, %s315
    $region4: #{tpu_custom_call.1} parent=1 // loop_header_branch
      %24 = sbr.rel (%p22) target = $region8
    $region5: #{tpu_custom_call.1} parent=1 // loop_body
      %s26 = ssub.s32 %s21, 1
      %s27 = ssub.s32 %s21, 2
      %s34 = sadd.s32 1, %s29
      %p35 = scmp.ge.s32.totalorder %s34, 1
      %s36 = scalar_select %p35, 0, %s34
      %s37 = sadd.s32 1, %s28
      %s38 = scalar_select %p35, %s37, %s28
      %p39 = scmp.ge.s32.totalorder %s38, 2
      %s40 = scalar_select %p39, 0, %s38
      %s41 = ssub.s32 %s28, %s40
      %s42 = ssub.s32 %s29, %s36
      %s43 = sor.u32 %s41, %s42
      %p44 = scmp.eq.s32.totalorder %s43, 0
      %s46 = sadd.s32 %s45, 1
      %s47 = scalar_select %p44, %s45, %s46
      %p50 = pneg %p44
      %p51 = scmp.eq.s32.totalorder %s21, 1
      %p52 = por %p50, %p51
      %p53 = scmp.ne.s32.totalorder %s45, %s48
      %p54 = scmp.eq.s32.totalorder %s21, 0
      %p55 = por %p53, %p54
      %p56 = scmp.ne.s32.totalorder %s45, %s48
      %p57 = scmp.eq.s32.totalorder %s26, 1
      %p58 = por %p56, %p57
      %p59 = scmp.ne.s32.totalorder %s48, %s49
      %p60 = scmp.eq.s32.totalorder %s26, 0
      %p61 = por %p59, %p60
      %p62 = scmp.ne.s32.totalorder %s48, %s49
      %p63 = scmp.eq.s32.totalorder %s27, 1
      %p64 = por %p62, %p63
      %p66 = scmp.ne.s32.totalorder %s49, %s65
      %p67 = scmp.eq.s32.totalorder %s27, 0
      %p68 = por %p66, %p67
      %s69 = ssub.s32 %s28, %s40
      %s70 = ssub.s32 %s29, %s36
      %s71 = sor.u32 %s69, %s70
      %p72 = scmp.eq.s32.totalorder %s71, 0
      %s74 = sadd.s32 %s73, 1
      %s75 = scalar_select %p72, %s73, %s74
      %p78 = pneg %p72
      %p79 = scmp.eq.s32.totalorder %s21, 1
      %p80 = por %p78, %p79
      %p81 = scmp.ne.s32.totalorder %s73, %s76
      %p82 = scmp.eq.s32.totalorder %s21, 0
      %p83 = por %p81, %p82
      %p84 = scmp.ne.s32.totalorder %s73, %s76
      %p85 = scmp.eq.s32.totalorder %s26, 1
      %p86 = por %p84, %p85
      %p87 = scmp.ne.s32.totalorder %s76, %s77
      %p88 = scmp.eq.s32.totalorder %s26, 0
      %p89 = por %p87, %p88
      %p90 = scmp.ne.s32.totalorder %s76, %s77
      %p91 = scmp.eq.s32.totalorder %s27, 1
      %p92 = por %p90, %p91
      %p94 = scmp.ne.s32.totalorder %s77, %s93
      %p95 = scmp.eq.s32.totalorder %s27, 0
      %p96 = por %p94, %p95
      %s98 = sadd.s32 %s97, 1
      %p101 = scmp.eq.s32.totalorder %s21, 1
      %p102 = scmp.ne.s32.totalorder %s97, %s99
      %p103 = scmp.eq.s32.totalorder %s21, 0
      %p104 = por %p102, %p103
      %p105 = scmp.ne.s32.totalorder %s97, %s99
      %p106 = scmp.eq.s32.totalorder %s26, 1
      %p107 = por %p105, %p106
      %p108 = scmp.ne.s32.totalorder %s99, %s100
      %p109 = scmp.eq.s32.totalorder %s26, 0
      %p110 = por %p108, %p109
      %p111 = scmp.ne.s32.totalorder %s99, %s100
      %p112 = scmp.eq.s32.totalorder %s27, 1
      %p113 = por %p111, %p112
      %p115 = scmp.ne.s32.totalorder %s100, %s114
      %p116 = scmp.eq.s32.totalorder %s27, 0
      %p117 = por %p115, %p116
      %s119 = sadd.s32 %s118, 1
      %p122 = scmp.eq.s32.totalorder %s21, 1
      %p123 = scmp.ne.s32.totalorder %s118, %s120
      %p124 = scmp.eq.s32.totalorder %s21, 0
      %p125 = por %p123, %p124
      %p126 = scmp.ne.s32.totalorder %s118, %s120
      %p127 = scmp.eq.s32.totalorder %s26, 1
      %p128 = por %p126, %p127
      %p129 = scmp.ne.s32.totalorder %s120, %s121
      %p130 = scmp.eq.s32.totalorder %s26, 0
      %p131 = por %p129, %p130
      %p132 = scmp.ne.s32.totalorder %s120, %s121
      %p133 = scmp.eq.s32.totalorder %s27, 1
      %p134 = por %p132, %p133
      %p136 = scmp.ne.s32.totalorder %s121, %s135
      %p137 = scmp.eq.s32.totalorder %s27, 0
      %p138 = por %p136, %p137
      %s140 = sadd.s32 %s139, 1
      %p143 = scmp.eq.s32.totalorder %s21, 1
      %p144 = scmp.ne.s32.totalorder %s139, %s141
      %p145 = scmp.eq.s32.totalorder %s21, 0
      %p146 = por %p144, %p145
      %p147 = scmp.ne.s32.totalorder %s139, %s141
      %p148 = scmp.eq.s32.totalorder %s26, 1
      %p149 = por %p147, %p148
      %p150 = scmp.ne.s32.totalorder %s141, %s142
      %p151 = scmp.eq.s32.totalorder %s26, 0
      %p152 = por %p150, %p151
      %p153 = scmp.ne.s32.totalorder %s141, %s142
      %p154 = scmp.eq.s32.totalorder %s27, 1
      %p155 = por %p153, %p154
      %p157 = scmp.ne.s32.totalorder %s142, %s156
      %p158 = scmp.eq.s32.totalorder %s27, 0
      %p159 = por %p157, %p158
      %s161 = sadd.s32 %s160, 1
      %p164 = scmp.eq.s32.totalorder %s21, 1
      %p165 = scmp.ne.s32.totalorder %s160, %s162
      %p166 = scmp.eq.s32.totalorder %s21, 0
      %p167 = por %p165, %p166
      %p168 = scmp.ne.s32.totalorder %s160, %s162
      %p169 = scmp.eq.s32.totalorder %s26, 1
      %p170 = por %p168, %p169
      %p171 = scmp.ne.s32.totalorder %s162, %s163
      %p172 = scmp.eq.s32.totalorder %s26, 0
      %p173 = por %p171, %p172
      %p174 = scmp.ne.s32.totalorder %s162, %s163
      %p175 = scmp.eq.s32.totalorder %s27, 1
      %p176 = por %p174, %p175
      %p178 = scmp.ne.s32.totalorder %s163, %s177
      %p179 = scmp.eq.s32.totalorder %s27, 0
      %p180 = por %p178, %p179
      %s182 = sadd.s32 %s181, 1
      %p185 = scmp.eq.s32.totalorder %s21, 1
      %p186 = scmp.ne.s32.totalorder %s181, %s183
      %p187 = scmp.eq.s32.totalorder %s21, 0
      %p188 = por %p186, %p187
      %p189 = scmp.ne.s32.totalorder %s181, %s183
      %p190 = scmp.eq.s32.totalorder %s26, 1
      %p191 = por %p189, %p190
      %p192 = scmp.ne.s32.totalorder %s183, %s184
      %p193 = scmp.eq.s32.totalorder %s26, 0
      %p194 = por %p192, %p193
      %p195 = scmp.ne.s32.totalorder %s183, %s184
      %p196 = scmp.eq.s32.totalorder %s27, 1
      %p197 = por %p195, %p196
      %p199 = scmp.ne.s32.totalorder %s184, %s198
      %p200 = scmp.eq.s32.totalorder %s27, 0
      %p201 = por %p199, %p200
      %s203 = sadd.s32 %s202, 1
      %p206 = scmp.eq.s32.totalorder %s21, 1
      %p207 = scmp.ne.s32.totalorder %s202, %s204
      %p208 = scmp.eq.s32.totalorder %s21, 0
      %p209 = por %p207, %p208
      %p210 = scmp.ne.s32.totalorder %s202, %s204
      %p211 = scmp.eq.s32.totalorder %s26, 1
      %p212 = por %p210, %p211
      %p213 = scmp.ne.s32.totalorder %s204, %s205
      %p214 = scmp.eq.s32.totalorder %s26, 0
      %p215 = por %p213, %p214
      %p216 = scmp.ne.s32.totalorder %s204, %s205
      %p217 = scmp.eq.s32.totalorder %s27, 1
      %p218 = por %p216, %p217
      %p220 = scmp.ne.s32.totalorder %s205, %s219
      %p221 = scmp.eq.s32.totalorder %s27, 0
      %p222 = por %p220, %p221
      %s224 = sadd.s32 %s223, 1
      %p227 = scmp.eq.s32.totalorder %s21, 1
      %p228 = scmp.ne.s32.totalorder %s223, %s225
      %p229 = scmp.eq.s32.totalorder %s21, 0
      %p230 = por %p228, %p229
      %p231 = scmp.ne.s32.totalorder %s223, %s225
      %p232 = scmp.eq.s32.totalorder %s26, 1
      %p233 = por %p231, %p232
      %p234 = scmp.ne.s32.totalorder %s225, %s226
      %p235 = scmp.eq.s32.totalorder %s26, 0
      %p236 = por %p234, %p235
      %p237 = scmp.ne.s32.totalorder %s225, %s226
      %p238 = scmp.eq.s32.totalorder %s27, 1
      %p239 = por %p237, %p238
      %p241 = scmp.ne.s32.totalorder %s226, %s240
      %p242 = scmp.eq.s32.totalorder %s27, 0
      %p243 = por %p241, %p242
      %s245 = sadd.s32 %s244, 1
      %p248 = scmp.eq.s32.totalorder %s21, 1
      %p249 = scmp.ne.s32.totalorder %s244, %s246
      %p250 = scmp.eq.s32.totalorder %s21, 0
      %p251 = por %p249, %p250
      %p252 = scmp.ne.s32.totalorder %s244, %s246
      %p253 = scmp.eq.s32.totalorder %s26, 1
      %p254 = por %p252, %p253
      %p255 = scmp.ne.s32.totalorder %s246, %s247
      %p256 = scmp.eq.s32.totalorder %s26, 0
      %p257 = por %p255, %p256
      %p258 = scmp.ne.s32.totalorder %s246, %s247
      %p259 = scmp.eq.s32.totalorder %s27, 1
      %p260 = por %p258, %p259
      %p262 = scmp.ne.s32.totalorder %s247, %s261
      %p263 = scmp.eq.s32.totalorder %s27, 0
      %p264 = por %p262, %p263
      %s266 = sadd.s32 %s265, 1
      %p269 = scmp.eq.s32.totalorder %s21, 1
      %p270 = scmp.ne.s32.totalorder %s265, %s267
      %p271 = scmp.eq.s32.totalorder %s21, 0
      %p272 = por %p270, %p271
      %p273 = scmp.ne.s32.totalorder %s265, %s267
      %p274 = scmp.eq.s32.totalorder %s26, 1
      %p275 = por %p273, %p274
      %p276 = scmp.ne.s32.totalorder %s267, %s268
      %p277 = scmp.eq.s32.totalorder %s26, 0
      %p278 = por %p276, %p277
      %p279 = scmp.ne.s32.totalorder %s267, %s268
      %p280 = scmp.eq.s32.totalorder %s27, 1
      %p281 = por %p279, %p280
      %p283 = scmp.ne.s32.totalorder %s268, %s282
      %p284 = scmp.eq.s32.totalorder %s27, 0
      %p285 = por %p283, %p284
      %s287 = sadd.s32 %s286, 1
      %p290 = scmp.eq.s32.totalorder %s21, 1
      %p291 = scmp.ne.s32.totalorder %s286, %s288
      %p292 = scmp.eq.s32.totalorder %s21, 0
      %p293 = por %p291, %p292
      %p294 = scmp.ne.s32.totalorder %s286, %s288
      %p295 = scmp.eq.s32.totalorder %s26, 1
      %p296 = por %p294, %p295
      %p297 = scmp.ne.s32.totalorder %s288, %s289
      %p298 = scmp.eq.s32.totalorder %s26, 0
      %p299 = por %p297, %p298
      %p300 = scmp.ne.s32.totalorder %s288, %s289
      %p301 = scmp.eq.s32.totalorder %s27, 1
      %p302 = por %p300, %p301
      %p304 = scmp.ne.s32.totalorder %s289, %s303
      %p305 = scmp.eq.s32.totalorder %s27, 0
      %p306 = por %p304, %p305
      %s307 = ssub.s32 %s28, %s40
      %s308 = ssub.s32 %s29, %s36
      %s309 = sor.u32 %s307, %s308
      %p310 = scmp.eq.s32.totalorder %s309, 0
      %s312 = sadd.s32 %s311, 1
      %s313 = scalar_select %p310, %s311, %s312
      %p316 = pneg %p310
      %p317 = scmp.eq.s32.totalorder %s21, 1
      %p318 = por %p316, %p317
      %p319 = scmp.ne.s32.totalorder %s311, %s314
      %p320 = scmp.eq.s32.totalorder %s21, 0
      %p321 = por %p319, %p320
      %p322 = scmp.ne.s32.totalorder %s311, %s314
      %p323 = scmp.eq.s32.totalorder %s26, 1
      %p324 = por %p322, %p323
      %p325 = scmp.ne.s32.totalorder %s314, %s315
      %p326 = scmp.eq.s32.totalorder %s26, 0
      %p327 = por %p325, %p326
      %p328 = scmp.ne.s32.totalorder %s314, %s315
      %p329 = scmp.eq.s32.totalorder %s27, 1
      %p330 = por %p328, %p329
      %p332 = scmp.ne.s32.totalorder %s315, %s331
      %p333 = scmp.eq.s32.totalorder %s27, 0
      %p334 = por %p332, %p333
      %p335 = scmp.le.s32.totalorder 1, %s21
      %p336 = scmp.lt.s32.totalorder %s21, 3
      %p337 = pnand %p335, %p336
      %p338 = pneg %p337
      // Predicated region
      $region9: #{tpu_custom_call.1} parent=5 // pred_check
        _
      $region10: #{tpu_custom_call.1} parent=5 // pred_check_branch
        %340 = sbr.rel (%p337) target = $region12
      $region11: #{tpu_custom_call.1} parent=5 // pred_region
        %s341 = ssub.s32 %s21, 1
        // Predicated region
        $region13: #{tpu_custom_call.1} parent=11 // pred_check
          %p342 = pneg %p110
        $region14: #{tpu_custom_call.1} parent=11 // pred_check_branch
          %344 = sbr.rel (%p342) target = $region16
        $region15: #{tpu_custom_call.1} parent=11 // pred_region
          _
        $region16: #{tpu_custom_call.1} parent=11 // pred_fallthru
          _
        // Predicated region
        $region17: #{tpu_custom_call.1} parent=11 // pred_check
          %p345 = pneg %p131
        $region18: #{tpu_custom_call.1} parent=11 // pred_check_branch
          %347 = sbr.rel (%p345) target = $region20
        $region19: #{tpu_custom_call.1} parent=11 // pred_region
          _
        $region20: #{tpu_custom_call.1} parent=11 // pred_fallthru
          _
        // Predicated region
        $region21: #{tpu_custom_call.1} parent=11 // pred_check
          %p348 = pneg %p152
        $region22: #{tpu_custom_call.1} parent=11 // pred_check_branch
          %350 = sbr.rel (%p348) target = $region24
        $region23: #{tpu_custom_call.1} parent=11 // pred_region
          _
        $region24: #{tpu_custom_call.1} parent=11 // pred_fallthru
          _
        // Predicated region
        $region25: #{tpu_custom_call.1} parent=11 // pred_check
          %p351 = pneg %p173
        $region26: #{tpu_custom_call.1} parent=11 // pred_check_branch
          %353 = sbr.rel (%p351) target = $region28
        $region27: #{tpu_custom_call.1} parent=11 // pred_region
          _
        $region28: #{tpu_custom_call.1} parent=11 // pred_fallthru
          _
        // Predicated region
        $region29: #{tpu_custom_call.1} parent=11 // pred_check
          %p354 = pneg %p194
        $region30: #{tpu_custom_call.1} parent=11 // pred_check_branch
          %356 = sbr.rel (%p354) target = $region32
        $region31: #{tpu_custom_call.1} parent=11 // pred_region
          _
        $region32: #{tpu_custom_call.1} parent=11 // pred_fallthru
          _
        // Predicated region
        $region33: #{tpu_custom_call.1} parent=11 // pred_check
          %p357 = pneg %p215
        $region34: #{tpu_custom_call.1} parent=11 // pred_check_branch
          %359 = sbr.rel (%p357) target = $region36
        $region35: #{tpu_custom_call.1} parent=11 // pred_region
          _
        $region36: #{tpu_custom_call.1} parent=11 // pred_fallthru
          _
        // Predicated region
        $region37: #{tpu_custom_call.1} parent=11 // pred_check
          %p360 = pneg %p236
        $region38: #{tpu_custom_call.1} parent=11 // pred_check_branch
          %362 = sbr.rel (%p360) target = $region40
        $region39: #{tpu_custom_call.1} parent=11 // pred_region
          _
        $region40: #{tpu_custom_call.1} parent=11 // pred_fallthru
          _
        // Predicated region
        $region41: #{tpu_custom_call.1} parent=11 // pred_check
          %p363 = pneg %p257
        $region42: #{tpu_custom_call.1} parent=11 // pred_check_branch
          %365 = sbr.rel (%p363) target = $region44
        $region43: #{tpu_custom_call.1} parent=11 // pred_region
          _
        $region44: #{tpu_custom_call.1} parent=11 // pred_fallthru
          _
        // Predicated region
        $region45: #{tpu_custom_call.1} parent=11 // pred_check
          %p366 = pneg %p278
        $region46: #{tpu_custom_call.1} parent=11 // pred_check_branch
          %368 = sbr.rel (%p366) target = $region48
        $region47: #{tpu_custom_call.1} parent=11 // pred_region
          _
        $region48: #{tpu_custom_call.1} parent=11 // pred_fallthru
          _
        // Predicated region
        $region49: #{tpu_custom_call.1} parent=11 // pred_check
          %p369 = pneg %p299
        $region50: #{tpu_custom_call.1} parent=11 // pred_check_branch
          %371 = sbr.rel (%p369) target = $region52
        $region51: #{tpu_custom_call.1} parent=11 // pred_region
          _
        $region52: #{tpu_custom_call.1} parent=11 // pred_fallthru
          _
      $region12: #{tpu_custom_call.1} parent=5 // pred_fallthru
        _
      %p372 = scmp.lt.s32.totalorder %s21, 2
      // Predicated region
      $region53: #{tpu_custom_call.1} parent=5 // pred_check
        %p373 = pneg %p372
      $region54: #{tpu_custom_call.1} parent=5 // pred_check_branch
        %375 = sbr.rel (%p373) target = $region56
      $region55: #{tpu_custom_call.1} parent=5 // pred_region
        // Predicated region
        $region57: #{tpu_custom_call.1} parent=55 // pred_check
          %p376 = pneg %p55
        $region58: #{tpu_custom_call.1} parent=55 // pred_check_branch
          %378 = sbr.rel (%p376) target = $region60
        $region59: #{tpu_custom_call.1} parent=55 // pred_region
          %p379 = scmp.lt.s32.totalorder %s28, 1
          %s380 = scalar_select %p379, %s28, 1
          %p381 = scmp.lt.s32.totalorder %s29, 0
          %s382 = scalar_select %p381, %s29, 0
          %s383 = sadd.s32 %s382, %s380
          %s384 = smul.addr %s383, 4
          %s385 = scalar_lea.vmem %s0, %s384
        $region60: #{tpu_custom_call.1} parent=55 // pred_fallthru
          _
        // Predicated region
        $region61: #{tpu_custom_call.1} parent=55 // pred_check
          %p386 = pneg %p83
        $region62: #{tpu_custom_call.1} parent=55 // pred_check_branch
          %388 = sbr.rel (%p386) target = $region64
        $region63: #{tpu_custom_call.1} parent=55 // pred_region
          %p389 = scmp.lt.s32.totalorder %s28, 1
          %s390 = scalar_select %p389, %s28, 1
          %p391 = scmp.lt.s32.totalorder %s29, 0
          %s392 = scalar_select %p391, %s29, 0
          %s393 = sadd.s32 %s392, %s390
          %s394 = smul.addr %s393, 4
          %s395 = scalar_lea.vmem %s1, %s394
        $region64: #{tpu_custom_call.1} parent=55 // pred_fallthru
          _
      $region56: #{tpu_custom_call.1} parent=5 // pred_fallthru
        _
      %p396 = scmp.le.s32.totalorder 1, %s21
      %p397 = scmp.lt.s32.totalorder %s21, 3
      %p398 = pnand %p396, %p397
      %p399 = pneg %p398
      // Predicated region
      $region65: #{tpu_custom_call.1} parent=5 // pred_check
        _
      $region66: #{tpu_custom_call.1} parent=5 // pred_check_branch
        %401 = sbr.rel (%p398) target = $region68
      $region67: #{tpu_custom_call.1} parent=5 // pred_region
        %s402 = ssub.s32 %s21, 1
        %p403 = scmp.lt.s32.totalorder %s30, 1
        %s404 = scalar_select %p403, %s30, 1
        %p405 = scmp.lt.s32.totalorder %s31, 0
        %s406 = scalar_select %p405, %s31, 0
        %s407 = sadd.s32 %s406, %s404
        %s408 = smul.addr %s407, 4
        %s409 = scalar_lea.vmem %s0, %s408
        %p410 = pneg %p61
        %p411 = pneg %p58
        %p412 = scmp.lt.s32.totalorder %s30, 1
        %s413 = scalar_select %p412, %s30, 1
        %p414 = scmp.lt.s32.totalorder %s31, 0
        %s415 = scalar_select %p414, %s31, 0
        %s416 = sadd.s32 %s415, %s413
        %s417 = smul.addr %s416, 4
        %s418 = scalar_lea.vmem %s1, %s417
        %p419 = pneg %p89
        %p420 = pneg %p86
        %p421 = pneg %p110
        %p422 = pneg %p107
        %p423 = pneg %p131
        %p424 = pneg %p128
        %p425 = pneg %p152
        %p426 = pneg %p149
        %p427 = pneg %p173
        %p428 = pneg %p170
        %p429 = pneg %p194
        %p430 = pneg %p191
        %p431 = pneg %p215
        %p432 = pneg %p212
        %p433 = pneg %p236
        %p434 = pneg %p233
        %p435 = pneg %p257
        %p436 = pneg %p254
        %p437 = pneg %p278
        %p438 = pneg %p275
        %p439 = pneg %p299
        %p440 = pneg %p296
        %p441 = pneg %p327
        %p442 = pneg %p324
        %s443 = sand.u32 %s314, 1
        %s444 = scalar_lea.sflag [#allocation3], %s443
        %s445 = sand.u32 %s314, 1
        %s446 = smul.addr %s445, 8
        %s447 = scalar_lea.vmem [#allocation2], %s446
        %p448 = scmp.lt.s32.totalorder %s30, 1
        %s449 = scalar_select %p448, %s30, 1
        %p450 = scmp.lt.s32.totalorder %s31, 0
        %s451 = scalar_select %p450, %s31, 0
        %s452 = sadd.s32 %s451, %s449
        %s453 = smul.addr %s452, 4
        %s454 = scalar_lea.vmem %s0, %s453
        %p455 = scmp.lt.s32.totalorder %s30, 1
        %s456 = scalar_select %p455, %s30, 1
        %p457 = scmp.lt.s32.totalorder %s31, 0
        %s458 = scalar_select %p457, %s31, 0
        %s459 = sadd.s32 %s458, %s456
        %s460 = smul.addr %s459, 4
        %s461 = scalar_lea.vmem %s1, %s460
        %v462 = vlaneseq
        %v463 = vand.u32 %v462, 127
        %s464 = smul.u32 %s31, 8
        %s465 = ssub.s32 %s464, 2
        %v466 = vstv %s465
        %v467 = vadd.s32 %v466, %v463
        %vm468 = vcmp.eq.s32.totalorder %v467, 0
        %vm469 = vcmp.eq.s32.totalorder %v467, 7
        %v470 = vld [vmem:[%s454] sm:$0xf]
        %v471 = vld [vmem:[%s461] sm:$0xf]
        %v472 = vld [vmem:[%s2] sm:$0xff]
        %v473 = vld [vmem:[%s3] sm:$0xff]
        %475 = vset.pattern.permute.xlu0 0
        %476 = vperm.xlu0 %475, %v473
        %v477 = vpop.permute.xlu0 %476
        %vm479 = vcmask 31744
        %v481 = vsel %vm479, %v472, 0
        %vm483 = vcmask 1043456
        %v485 = vsel %vm483, %v470, 0
        %487 = vmatprep.subr.mxu0 0.0
        %488 = vmatpush1.msra.mxu0 0.0
        %489 = vmatprep.subr.mxu0 0.0
        %490 = vmatpush1.msra.mxu0 0.0
        %491 = vmatprep.subr.mxu0 0.0
        %492 = vmatpush1.msra.mxu0 0.0
        %493 = vmatprep.subr.mxu0 0.0
        %494 = vmatpush1.msra.mxu0 0.0
        %495 = vmatprep.subr.mxu0 0.0
        %496 = vmatpush1.msra.mxu0 0.0
        %497 = vmatprep.subr.mxu0 0.0
        %498 = vmatpush1.msra.mxu0 0.0
        %499 = vmatprep.subr.mxu0 0.0
        %500 = vmatpush1.msra.mxu0 0.0
        %501 = vmatprep.subr.mxu0 0.0
        %502 = vmatpush1.msra.mxu0 0.0
        %503 = vmatprep.subr.mxu0 0.0
        %504 = vmatpush1.msra.mxu0 0.0
        %505 = vmatprep.subr.mxu0 0.0
        %506 = vmatpush1.msra.mxu0 0.0
        %507 = vmatprep.subr.mxu0 0.0
        %508 = vmatpush1.msra.mxu0 0.0
        %509 = vmatprep.subr.mxu0 0.0
        %510 = vmatpush1.msra.mxu0 0.0
        %511 = vmatprep.subr.mxu0 0.0
        %512 = vmatpush1.msra.mxu0 0.0
        %513 = vmatprep.subr.mxu0 0.0
        %514 = vmatpush1.msra.mxu0 0.0
        %515 = vmatprep.subr.mxu0 0.0
        %516 = vmatpush1.msra.mxu0 0.0
        %517 = vmatprep.subr.mxu0 0.0
        %518 = vmatpush1.msra.mxu0 %v485
        %519 = vmatprep.subr.mxu0 0.0
        %520 = vmatpush2.msra.mxu0 0.0
        %521 = vmatprep.subr.mxu0 0.0
        %522 = vmatpush2.msra.mxu0 0.0
        %523 = vmatprep.subr.mxu0 0.0
        %524 = vmatpush2.msra.mxu0 0.0
        %525 = vmatprep.subr.mxu0 0.0
        %526 = vmatpush2.msra.mxu0 0.0
        %527 = vmatprep.subr.mxu0 0.0
        %528 = vmatpush2.msra.mxu0 0.0
        %529 = vmatprep.subr.mxu0 0.0
        %530 = vmatpush2.msra.mxu0 0.0
        %531 = vmatprep.subr.mxu0 0.0
        %532 = vmatpush2.msra.mxu0 0.0
        %533 = vmatprep.subr.mxu0 0.0
        %534 = vmatpush2.msra.mxu0 0.0
        %535 = vmatprep.subr.mxu0 0.0
        %536 = vmatpush2.msra.mxu0 0.0
        %537 = vmatprep.subr.mxu0 0.0
        %538 = vmatpush2.msra.mxu0 0.0
        %539 = vmatprep.subr.mxu0 0.0
        %540 = vmatpush2.msra.mxu0 0.0
        %541 = vmatprep.subr.mxu0 0.0
        %542 = vmatpush2.msra.mxu0 0.0
        %543 = vmatprep.subr.mxu0 0.0
        %544 = vmatpush2.msra.mxu0 0.0
        %545 = vmatprep.subr.mxu0 0.0
        %546 = vmatpush2.msra.mxu0 0.0
        %547 = vmatprep.subr.mxu0 0.0
        %548 = vmatpush2.msra.mxu0 0.0
        %549 = vmatprep.subr.mxu0 0.0
        %550 = vmatpush2.msra.mxu0 0.0
        %551 = vmatprep.mubr.f32.mxu0 0.0
        %552 = vmatmul.mubr.f32.gmra.mxu0 %v481
        %v553 = vpop.f32.mrf.mxu0
        %v554 = vadd.f32 %v477, %v553
        %v555 = vpop.f32.mrf.mxu0
        %556 = vdwg.mxu0
        %v558 = vsel %vm483, %v471, 0
        %560 = vmatprep.subr.mxu0 0.0
        %561 = vmatpush1.msra.mxu0 0.0
        %562 = vmatprep.subr.mxu0 0.0
        %563 = vmatpush1.msra.mxu0 0.0
        %564 = vmatprep.subr.mxu0 0.0
        %565 = vmatpush1.msra.mxu0 0.0
        %566 = vmatprep.subr.mxu0 0.0
        %567 = vmatpush1.msra.mxu0 0.0
        %568 = vmatprep.subr.mxu0 0.0
        %569 = vmatpush1.msra.mxu0 0.0
        %570 = vmatprep.subr.mxu0 0.0
        %571 = vmatpush1.msra.mxu0 0.0
        %572 = vmatprep.subr.mxu0 0.0
        %573 = vmatpush1.msra.mxu0 0.0
        %574 = vmatprep.subr.mxu0 0.0
        %575 = vmatpush1.msra.mxu0 0.0
        %576 = vmatprep.subr.mxu0 0.0
        %577 = vmatpush1.msra.mxu0 0.0
        %578 = vmatprep.subr.mxu0 0.0
        %579 = vmatpush1.msra.mxu0 0.0
        %580 = vmatprep.subr.mxu0 0.0
        %581 = vmatpush1.msra.mxu0 0.0
        %582 = vmatprep.subr.mxu0 0.0
        %583 = vmatpush1.msra.mxu0 0.0
        %584 = vmatprep.subr.mxu0 0.0
        %585 = vmatpush1.msra.mxu0 0.0
        %586 = vmatprep.subr.mxu0 0.0
        %587 = vmatpush1.msra.mxu0 0.0
        %588 = vmatprep.subr.mxu0 0.0
        %589 = vmatpush1.msra.mxu0 0.0
        %590 = vmatprep.subr.mxu0 0.0
        %591 = vmatpush1.msra.mxu0 %v558
        %592 = vmatprep.subr.mxu0 0.0
        %593 = vmatpush2.msra.mxu0 0.0
        %594 = vmatprep.subr.mxu0 0.0
        %595 = vmatpush2.msra.mxu0 0.0
        %596 = vmatprep.subr.mxu0 0.0
        %597 = vmatpush2.msra.mxu0 0.0
        %598 = vmatprep.subr.mxu0 0.0
        %599 = vmatpush2.msra.mxu0 0.0
        %600 = vmatprep.subr.mxu0 0.0
        %601 = vmatpush2.msra.mxu0 0.0
        %602 = vmatprep.subr.mxu0 0.0
        %603 = vmatpush2.msra.mxu0 0.0
        %604 = vmatprep.subr.mxu0 0.0
        %605 = vmatpush2.msra.mxu0 0.0
        %606 = vmatprep.subr.mxu0 0.0
        %607 = vmatpush2.msra.mxu0 0.0
        %608 = vmatprep.subr.mxu0 0.0
        %609 = vmatpush2.msra.mxu0 0.0
        %610 = vmatprep.subr.mxu0 0.0
        %611 = vmatpush2.msra.mxu0 0.0
        %612 = vmatprep.subr.mxu0 0.0
        %613 = vmatpush2.msra.mxu0 0.0
        %614 = vmatprep.subr.mxu0 0.0
        %615 = vmatpush2.msra.mxu0 0.0
        %616 = vmatprep.subr.mxu0 0.0
        %617 = vmatpush2.msra.mxu0 0.0
        %618 = vmatprep.subr.mxu0 0.0
        %619 = vmatpush2.msra.mxu0 0.0
        %620 = vmatprep.subr.mxu0 0.0
        %621 = vmatpush2.msra.mxu0 0.0
        %622 = vmatprep.subr.mxu0 0.0
        %623 = vmatpush2.msra.mxu0 0.0
        %624 = vmatprep.mubr.f32.mxu0 0.0
        %625 = vmatmul.mubr.f32.gmra.mxu0 %v481
        %v626 = vpop.f32.mrf.mxu0
        %v627 = vadd.f32 %v477, %v626
        %v628 = vpop.f32.mrf.mxu0
        %629 = vdwg.mxu0
        %v630 = vld [vmem:[%s4] sm:$0xff]
        %v631 = vld [vmem:[%s5] sm:$0xff]
        %632 = vrot.lane.b32.xlu0 %v471, 1
        %v633 = vpop.permute.xlu0 %632
        %vm635 = vcmask 7168
        %v636 = vsel %vm635, %v471, %v633
        %v637 = vsel %vm468, 1, 0
        %vm638 = vcmp.eq.s32.totalorder %v637, 1
        %v639 = vsel %vm638, %v470, %v636
        %640 = vrot.lane.b32.xlu0 %v470, 127
        %v641 = vpop.permute.xlu0 %640
        %vm643 = vcmask 89088
        %v644 = vsel %vm643, %v641, %v470
        %v645 = vsel %vm469, 1, 0
        %vm646 = vcmp.eq.s32.totalorder %v645, 1
        %v647 = vsel %vm646, %v471, %v644
        %v648 = vrot.slane %v470, 4
        %v650 = vsel %vm483, %v639, %v648
        %v651 = vrot.slane %v471, 4
        %v653 = vsel %vm483, %v470, %v651
        %655 = vset.pattern.permute.xlu0 0
        %656 = vperm.xlu0 %655, %v631
        %v657 = vpop.permute.xlu0 %656
        %vm659 = vcmask 97280
        %v661 = vsel %vm659, %v630, 0
        %663 = vmatprep.subr.mxu0 0.0
        %664 = vmatpush1.msra.mxu0 0.0
        %665 = vmatprep.subr.mxu0 0.0
        %666 = vmatpush1.msra.mxu0 0.0
        %667 = vmatprep.subr.mxu0 0.0
        %668 = vmatpush1.msra.mxu0 0.0
        %669 = vmatprep.subr.mxu0 0.0
        %670 = vmatpush1.msra.mxu0 0.0
        %671 = vmatprep.subr.mxu0 0.0
        %672 = vmatpush1.msra.mxu0 0.0
        %673 = vmatprep.subr.mxu0 0.0
        %674 = vmatpush1.msra.mxu0 0.0
        %675 = vmatprep.subr.mxu0 0.0
        %676 = vmatpush1.msra.mxu0 0.0
        %677 = vmatprep.subr.mxu0 0.0
        %678 = vmatpush1.msra.mxu0 0.0
        %679 = vmatprep.subr.mxu0 0.0
        %680 = vmatpush1.msra.mxu0 0.0
        %681 = vmatprep.subr.mxu0 0.0
        %682 = vmatpush1.msra.mxu0 0.0
        %683 = vmatprep.subr.mxu0 0.0
        %684 = vmatpush1.msra.mxu0 0.0
        %685 = vmatprep.subr.mxu0 0.0
        %686 = vmatpush1.msra.mxu0 0.0
        %687 = vmatprep.subr.mxu0 0.0
        %688 = vmatpush1.msra.mxu0 0.0
        %689 = vmatprep.subr.mxu0 0.0
        %690 = vmatpush1.msra.mxu0 0.0
        %691 = vmatprep.subr.mxu0 0.0
        %692 = vmatpush1.msra.mxu0 %v558
        %693 = vmatprep.subr.mxu0 0.0
        %694 = vmatpush1.msra.mxu0 %v650
        %695 = vmatprep.subr.mxu0 0.0
        %696 = vmatpush2.msra.mxu0 0.0
        %697 = vmatprep.subr.mxu0 0.0
        %698 = vmatpush2.msra.mxu0 0.0
        %699 = vmatprep.subr.mxu0 0.0
        %700 = vmatpush2.msra.mxu0 0.0
        %701 = vmatprep.subr.mxu0 0.0
        %702 = vmatpush2.msra.mxu0 0.0
        %703 = vmatprep.subr.mxu0 0.0
        %704 = vmatpush2.msra.mxu0 0.0
        %705 = vmatprep.subr.mxu0 0.0
        %706 = vmatpush2.msra.mxu0 0.0
        %707 = vmatprep.subr.mxu0 0.0
        %708 = vmatpush2.msra.mxu0 0.0
        %709 = vmatprep.subr.mxu0 0.0
        %710 = vmatpush2.msra.mxu0 0.0
        %711 = vmatprep.subr.mxu0 0.0
        %712 = vmatpush2.msra.mxu0 0.0
        %713 = vmatprep.subr.mxu0 0.0
        %714 = vmatpush2.msra.mxu0 0.0
        %715 = vmatprep.subr.mxu0 0.0
        %716 = vmatpush2.msra.mxu0 0.0
        %717 = vmatprep.subr.mxu0 0.0
        %718 = vmatpush2.msra.mxu0 0.0
        %719 = vmatprep.subr.mxu0 0.0
        %720 = vmatpush2.msra.mxu0 0.0
        %721 = vmatprep.subr.mxu0 0.0
        %722 = vmatpush2.msra.mxu0 0.0
        %723 = vmatprep.subr.mxu0 0.0
        %724 = vmatpush2.msra.mxu0 0.0
        %725 = vmatprep.subr.mxu0 0.0
        %726 = vmatpush2.msra.mxu0 0.0
        %727 = vmatprep.mubr.f32.mxu0 0.0
        %728 = vmatmul.mubr.f32.gmra.mxu0 %v661
        %v729 = vpop.f32.mrf.mxu0
        %v730 = vadd.f32 %v657, %v729
        %v731 = vpop.f32.mrf.mxu0
        %732 = vdwg.mxu0
        %v734 = vsel %vm483, %v647, 0
        %736 = vmatprep.subr.mxu0 0.0
        %737 = vmatpush1.msra.mxu0 0.0
        %738 = vmatprep.subr.mxu0 0.0
        %739 = vmatpush1.msra.mxu0 0.0
        %740 = vmatprep.subr.mxu0 0.0
        %741 = vmatpush1.msra.mxu0 0.0
        %742 = vmatprep.subr.mxu0 0.0
        %743 = vmatpush1.msra.mxu0 0.0
        %744 = vmatprep.subr.mxu0 0.0
        %745 = vmatpush1.msra.mxu0 0.0
        %746 = vmatprep.subr.mxu0 0.0
        %747 = vmatpush1.msra.mxu0 0.0
        %748 = vmatprep.subr.mxu0 0.0
        %749 = vmatpush1.msra.mxu0 0.0
        %750 = vmatprep.subr.mxu0 0.0
        %751 = vmatpush1.msra.mxu0 0.0
        %752 = vmatprep.subr.mxu0 0.0
        %753 = vmatpush1.msra.mxu0 0.0
        %754 = vmatprep.subr.mxu0 0.0
        %755 = vmatpush1.msra.mxu0 0.0
        %756 = vmatprep.subr.mxu0 0.0
        %757 = vmatpush1.msra.mxu0 0.0
        %758 = vmatprep.subr.mxu0 0.0
        %759 = vmatpush1.msra.mxu0 0.0
        %760 = vmatprep.subr.mxu0 0.0
        %761 = vmatpush1.msra.mxu0 0.0
        %762 = vmatprep.subr.mxu0 0.0
        %763 = vmatpush1.msra.mxu0 0.0
        %764 = vmatprep.subr.mxu0 0.0
        %765 = vmatpush1.msra.mxu0 %v734
        %766 = vmatprep.subr.mxu0 0.0
        %767 = vmatpush1.msra.mxu0 %v653
        %768 = vmatprep.subr.mxu0 0.0
        %769 = vmatpush2.msra.mxu0 0.0
        %770 = vmatprep.subr.mxu0 0.0
        %771 = vmatpush2.msra.mxu0 0.0
        %772 = vmatprep.subr.mxu0 0.0
        %773 = vmatpush2.msra.mxu0 0.0
        %774 = vmatprep.subr.mxu0 0.0
        %775 = vmatpush2.msra.mxu0 0.0
        %776 = vmatprep.subr.mxu0 0.0
        %777 = vmatpush2.msra.mxu0 0.0
        %778 = vmatprep.subr.mxu0 0.0
        %779 = vmatpush2.msra.mxu0 0.0
        %780 = vmatprep.subr.mxu0 0.0
        %781 = vmatpush2.msra.mxu0 0.0
        %782 = vmatprep.subr.mxu0 0.0
        %783 = vmatpush2.msra.mxu0 0.0
        %784 = vmatprep.subr.mxu0 0.0
        %785 = vmatpush2.msra.mxu0 0.0
        %786 = vmatprep.subr.mxu0 0.0
        %787 = vmatpush2.msra.mxu0 0.0
        %788 = vmatprep.subr.mxu0 0.0
        %789 = vmatpush2.msra.mxu0 0.0
        %790 = vmatprep.subr.mxu0 0.0
        %791 = vmatpush2.msra.mxu0 0.0
        %792 = vmatprep.subr.mxu0 0.0
        %793 = vmatpush2.msra.mxu0 0.0
        %794 = vmatprep.subr.mxu0 0.0
        %795 = vmatpush2.msra.mxu0 0.0
        %796 = vmatprep.subr.mxu0 0.0
        %797 = vmatpush2.msra.mxu0 0.0
        %798 = vmatprep.subr.mxu0 0.0
        %799 = vmatpush2.msra.mxu0 0.0
        %800 = vmatprep.mubr.f32.mxu0 0.0
        %801 = vmatmul.mubr.f32.gmra.mxu0 %v661
        %v802 = vpop.f32.mrf.mxu0
        %v803 = vadd.f32 %v657, %v802
        %v804 = vpop.f32.mrf.mxu0
        %805 = vdwg.mxu0
        %v806 = vmax.f32 %v730, 0.0
        %v807 = vmax.f32 %v803, 0.0
        %v808 = vld [vmem:[%s6] sm:$0xff]
        %v809 = vld [vmem:[%s7] sm:$0xff]
        %811 = vrot.lane.b32.xlu0 %v807, 1
        %v812 = vpop.permute.xlu0 %811
        %v814 = vsel %vm635, %v807, %v812
        %v815 = vsel %vm638, %v806, %v814
        %817 = vrot.lane.b32.xlu0 %v806, 127
        %v818 = vpop.permute.xlu0 %817
        %v820 = vsel %vm643, %v818, %v806
        %v821 = vsel %vm646, %v807, %v820
        %823 = vset.pattern.permute.xlu0 0
        %824 = vperm.xlu0 %823, %v809
        %v825 = vpop.permute.xlu0 %824
        %vm827 = vcmask 195584
        %v829 = vsel %vm827, %v808, 0
        %831 = vmatprep.subr.mxu0 0.0
        %832 = vmatpush1.msra.mxu0 0.0
        %833 = vmatprep.subr.mxu0 0.0
        %834 = vmatpush1.msra.mxu0 0.0
        %835 = vmatprep.subr.mxu0 0.0
        %836 = vmatpush1.msra.mxu0 0.0
        %837 = vmatprep.subr.mxu0 0.0
        %838 = vmatpush1.msra.mxu0 0.0
        %839 = vmatprep.subr.mxu0 0.0
        %840 = vmatpush1.msra.mxu0 0.0
        %841 = vmatprep.subr.mxu0 0.0
        %842 = vmatpush1.msra.mxu0 0.0
        %843 = vmatprep.subr.mxu0 0.0
        %844 = vmatpush1.msra.mxu0 0.0
        %845 = vmatprep.subr.mxu0 0.0
        %846 = vmatpush1.msra.mxu0 0.0
        %847 = vmatprep.subr.mxu0 0.0
        %848 = vmatpush1.msra.mxu0 0.0
        %849 = vmatprep.subr.mxu0 0.0
        %850 = vmatpush1.msra.mxu0 0.0
        %851 = vmatprep.subr.mxu0 0.0
        %852 = vmatpush1.msra.mxu0 0.0
        %853 = vmatprep.subr.mxu0 0.0
        %854 = vmatpush1.msra.mxu0 0.0
        %855 = vmatprep.subr.mxu0 0.0
        %856 = vmatpush1.msra.mxu0 0.0
        %857 = vmatprep.subr.mxu0 0.0
        %858 = vmatpush1.msra.mxu0 %v807
        %859 = vmatprep.subr.mxu0 0.0
        %860 = vmatpush1.msra.mxu0 %v806
        %861 = vmatprep.subr.mxu0 0.0
        %862 = vmatpush1.msra.mxu0 %v815
        %863 = vmatprep.subr.mxu0 0.0
        %864 = vmatpush2.msra.mxu0 0.0
        %865 = vmatprep.subr.mxu0 0.0
        %866 = vmatpush2.msra.mxu0 0.0
        %867 = vmatprep.subr.mxu0 0.0
        %868 = vmatpush2.msra.mxu0 0.0
        %869 = vmatprep.subr.mxu0 0.0
        %870 = vmatpush2.msra.mxu0 0.0
        %871 = vmatprep.subr.mxu0 0.0
        %872 = vmatpush2.msra.mxu0 0.0
        %873 = vmatprep.subr.mxu0 0.0
        %874 = vmatpush2.msra.mxu0 0.0
        %875 = vmatprep.subr.mxu0 0.0
        %876 = vmatpush2.msra.mxu0 0.0
        %877 = vmatprep.subr.mxu0 0.0
        %878 = vmatpush2.msra.mxu0 0.0
        %879 = vmatprep.subr.mxu0 0.0
        %880 = vmatpush2.msra.mxu0 0.0
        %881 = vmatprep.subr.mxu0 0.0
        %882 = vmatpush2.msra.mxu0 0.0
        %883 = vmatprep.subr.mxu0 0.0
        %884 = vmatpush2.msra.mxu0 0.0
        %885 = vmatprep.subr.mxu0 0.0
        %886 = vmatpush2.msra.mxu0 0.0
        %887 = vmatprep.subr.mxu0 0.0
        %888 = vmatpush2.msra.mxu0 0.0
        %889 = vmatprep.subr.mxu0 0.0
        %890 = vmatpush2.msra.mxu0 0.0
        %891 = vmatprep.subr.mxu0 0.0
        %892 = vmatpush2.msra.mxu0 0.0
        %893 = vmatprep.subr.mxu0 0.0
        %894 = vmatpush2.msra.mxu0 0.0
        %895 = vmatprep.mubr.f32.mxu0 0.0
        %896 = vmatmul.mubr.f32.gmra.mxu0 %v829
        %v897 = vpop.f32.mrf.mxu0
        %v898 = vadd.f32 %v825, %v897
        %v899 = vpop.f32.mrf.mxu0
        %900 = vdwg.mxu0
        %901 = vmatprep.subr.mxu0 0.0
        %902 = vmatpush1.msra.mxu0 0.0
        %903 = vmatprep.subr.mxu0 0.0
        %904 = vmatpush1.msra.mxu0 0.0
        %905 = vmatprep.subr.mxu0 0.0
        %906 = vmatpush1.msra.mxu0 0.0
        %907 = vmatprep.subr.mxu0 0.0
        %908 = vmatpush1.msra.mxu0 0.0
        %909 = vmatprep.subr.mxu0 0.0
        %910 = vmatpush1.msra.mxu0 0.0
        %911 = vmatprep.subr.mxu0 0.0
        %912 = vmatpush1.msra.mxu0 0.0
        %913 = vmatprep.subr.mxu0 0.0
        %914 = vmatpush1.msra.mxu0 0.0
        %915 = vmatprep.subr.mxu0 0.0
        %916 = vmatpush1.msra.mxu0 0.0
        %917 = vmatprep.subr.mxu0 0.0
        %918 = vmatpush1.msra.mxu0 0.0
        %919 = vmatprep.subr.mxu0 0.0
        %920 = vmatpush1.msra.mxu0 0.0
        %921 = vmatprep.subr.mxu0 0.0
        %922 = vmatpush1.msra.mxu0 0.0
        %923 = vmatprep.subr.mxu0 0.0
        %924 = vmatpush1.msra.mxu0 0.0
        %925 = vmatprep.subr.mxu0 0.0
        %926 = vmatpush1.msra.mxu0 0.0
        %927 = vmatprep.subr.mxu0 0.0
        %928 = vmatpush1.msra.mxu0 %v821
        %929 = vmatprep.subr.mxu0 0.0
        %930 = vmatpush1.msra.mxu0 %v807
        %931 = vmatprep.subr.mxu0 0.0
        %932 = vmatpush1.msra.mxu0 %v806
        %933 = vmatprep.subr.mxu0 0.0
        %934 = vmatpush2.msra.mxu0 0.0
        %935 = vmatprep.subr.mxu0 0.0
        %936 = vmatpush2.msra.mxu0 0.0
        %937 = vmatprep.subr.mxu0 0.0
        %938 = vmatpush2.msra.mxu0 0.0
        %939 = vmatprep.subr.mxu0 0.0
        %940 = vmatpush2.msra.mxu0 0.0
        %941 = vmatprep.subr.mxu0 0.0
        %942 = vmatpush2.msra.mxu0 0.0
        %943 = vmatprep.subr.mxu0 0.0
        %944 = vmatpush2.msra.mxu0 0.0
        %945 = vmatprep.subr.mxu0 0.0
        %946 = vmatpush2.msra.mxu0 0.0
        %947 = vmatprep.subr.mxu0 0.0
        %948 = vmatpush2.msra.mxu0 0.0
        %949 = vmatprep.subr.mxu0 0.0
        %950 = vmatpush2.msra.mxu0 0.0
        %951 = vmatprep.subr.mxu0 0.0
        %952 = vmatpush2.msra.mxu0 0.0
        %953 = vmatprep.subr.mxu0 0.0
        %954 = vmatpush2.msra.mxu0 0.0
        %955 = vmatprep.subr.mxu0 0.0
        %956 = vmatpush2.msra.mxu0 0.0
        %957 = vmatprep.subr.mxu0 0.0
        %958 = vmatpush2.msra.mxu0 0.0
        %959 = vmatprep.subr.mxu0 0.0
        %960 = vmatpush2.msra.mxu0 0.0
        %961 = vmatprep.subr.mxu0 0.0
        %962 = vmatpush2.msra.mxu0 0.0
        %963 = vmatprep.subr.mxu0 0.0
        %964 = vmatpush2.msra.mxu0 0.0
        %965 = vmatprep.mubr.f32.mxu0 0.0
        %966 = vmatmul.mubr.f32.gmra.mxu0 %v829
        %v967 = vpop.f32.mrf.mxu0
        %v968 = vadd.f32 %v825, %v967
        %v969 = vpop.f32.mrf.mxu0
        %970 = vdwg.mxu0
        %v971 = vmax.f32 %v898, 0.0
        %v972 = vmax.f32 %v968, 0.0
        %v973 = vld [vmem:[%s8] sm:$0xff]
        %v974 = vld [vmem:[%s9] sm:$0xff]
        %976 = vrot.lane.b32.xlu0 %v972, 1
        %v977 = vpop.permute.xlu0 %976
        %v979 = vsel %vm635, %v972, %v977
        %v980 = vsel %vm638, %v971, %v979
        %982 = vrot.lane.b32.xlu0 %v971, 127
        %v983 = vpop.permute.xlu0 %982
        %v985 = vsel %vm643, %v983, %v971
        %v986 = vsel %vm646, %v972, %v985
        %988 = vset.pattern.permute.xlu0 0
        %989 = vperm.xlu0 %988, %v974
        %v990 = vpop.permute.xlu0 %989
        %v993 = vsel %vm827, %v973, 0
        %995 = vmatprep.subr.mxu0 0.0
        %996 = vmatpush1.msra.mxu0 0.0
        %997 = vmatprep.subr.mxu0 0.0
        %998 = vmatpush1.msra.mxu0 0.0
        %999 = vmatprep.subr.mxu0 0.0
        %1000 = vmatpush1.msra.mxu0 0.0
        %1001 = vmatprep.subr.mxu0 0.0
        %1002 = vmatpush1.msra.mxu0 0.0
        %1003 = vmatprep.subr.mxu0 0.0
        %1004 = vmatpush1.msra.mxu0 0.0
        %1005 = vmatprep.subr.mxu0 0.0
        %1006 = vmatpush1.msra.mxu0 0.0
        %1007 = vmatprep.subr.mxu0 0.0
        %1008 = vmatpush1.msra.mxu0 0.0
        %1009 = vmatprep.subr.mxu0 0.0
        %1010 = vmatpush1.msra.mxu0 0.0
        %1011 = vmatprep.subr.mxu0 0.0
        %1012 = vmatpush1.msra.mxu0 0.0
        %1013 = vmatprep.subr.mxu0 0.0
        %1014 = vmatpush1.msra.mxu0 0.0
        %1015 = vmatprep.subr.mxu0 0.0
        %1016 = vmatpush1.msra.mxu0 0.0
        %1017 = vmatprep.subr.mxu0 0.0
        %1018 = vmatpush1.msra.mxu0 0.0
        %1019 = vmatprep.subr.mxu0 0.0
        %1020 = vmatpush1.msra.mxu0 0.0
        %1021 = vmatprep.subr.mxu0 0.0
        %1022 = vmatpush1.msra.mxu0 %v972
        %1023 = vmatprep.subr.mxu0 0.0
        %1024 = vmatpush1.msra.mxu0 %v971
        %1025 = vmatprep.subr.mxu0 0.0
        %1026 = vmatpush1.msra.mxu0 %v980
        %1027 = vmatprep.subr.mxu0 0.0
        %1028 = vmatpush2.msra.mxu0 0.0
        %1029 = vmatprep.subr.mxu0 0.0
        %1030 = vmatpush2.msra.mxu0 0.0
        %1031 = vmatprep.subr.mxu0 0.0
        %1032 = vmatpush2.msra.mxu0 0.0
        %1033 = vmatprep.subr.mxu0 0.0
        %1034 = vmatpush2.msra.mxu0 0.0
        %1035 = vmatprep.subr.mxu0 0.0
        %1036 = vmatpush2.msra.mxu0 0.0
        %1037 = vmatprep.subr.mxu0 0.0
        %1038 = vmatpush2.msra.mxu0 0.0
        %1039 = vmatprep.subr.mxu0 0.0
        %1040 = vmatpush2.msra.mxu0 0.0
        %1041 = vmatprep.subr.mxu0 0.0
        %1042 = vmatpush2.msra.mxu0 0.0
        %1043 = vmatprep.subr.mxu0 0.0
        %1044 = vmatpush2.msra.mxu0 0.0
        %1045 = vmatprep.subr.mxu0 0.0
        %1046 = vmatpush2.msra.mxu0 0.0
        %1047 = vmatprep.subr.mxu0 0.0
        %1048 = vmatpush2.msra.mxu0 0.0
        %1049 = vmatprep.subr.mxu0 0.0
        %1050 = vmatpush2.msra.mxu0 0.0
        %1051 = vmatprep.subr.mxu0 0.0
        %1052 = vmatpush2.msra.mxu0 0.0
        %1053 = vmatprep.subr.mxu0 0.0
        %1054 = vmatpush2.msra.mxu0 0.0
        %1055 = vmatprep.subr.mxu0 0.0
        %1056 = vmatpush2.msra.mxu0 0.0
        %1057 = vmatprep.subr.mxu0 0.0
        %1058 = vmatpush2.msra.mxu0 0.0
        %1059 = vmatprep.mubr.f32.mxu0 0.0
        %1060 = vmatmul.mubr.f32.gmra.mxu0 %v993
        %v1061 = vpop.f32.mrf.mxu0
        %v1062 = vadd.f32 %v990, %v1061
        %v1063 = vpop.f32.mrf.mxu0
        %1064 = vdwg.mxu0
        %1065 = vmatprep.subr.mxu0 0.0
        %1066 = vmatpush1.msra.mxu0 0.0
        %1067 = vmatprep.subr.mxu0 0.0
        %1068 = vmatpush1.msra.mxu0 0.0
        %1069 = vmatprep.subr.mxu0 0.0
        %1070 = vmatpush1.msra.mxu0 0.0
        %1071 = vmatprep.subr.mxu0 0.0
        %1072 = vmatpush1.msra.mxu0 0.0
        %1073 = vmatprep.subr.mxu0 0.0
        %1074 = vmatpush1.msra.mxu0 0.0
        %1075 = vmatprep.subr.mxu0 0.0
        %1076 = vmatpush1.msra.mxu0 0.0
        %1077 = vmatprep.subr.mxu0 0.0
        %1078 = vmatpush1.msra.mxu0 0.0
        %1079 = vmatprep.subr.mxu0 0.0
        %1080 = vmatpush1.msra.mxu0 0.0
        %1081 = vmatprep.subr.mxu0 0.0
        %1082 = vmatpush1.msra.mxu0 0.0
        %1083 = vmatprep.subr.mxu0 0.0
        %1084 = vmatpush1.msra.mxu0 0.0
        %1085 = vmatprep.subr.mxu0 0.0
        %1086 = vmatpush1.msra.mxu0 0.0
        %1087 = vmatprep.subr.mxu0 0.0
        %1088 = vmatpush1.msra.mxu0 0.0
        %1089 = vmatprep.subr.mxu0 0.0
        %1090 = vmatpush1.msra.mxu0 0.0
        %1091 = vmatprep.subr.mxu0 0.0
        %1092 = vmatpush1.msra.mxu0 %v986
        %1093 = vmatprep.subr.mxu0 0.0
        %1094 = vmatpush1.msra.mxu0 %v972
        %1095 = vmatprep.subr.mxu0 0.0
        %1096 = vmatpush1.msra.mxu0 %v971
        %1097 = vmatprep.subr.mxu0 0.0
        %1098 = vmatpush2.msra.mxu0 0.0
        %1099 = vmatprep.subr.mxu0 0.0
        %1100 = vmatpush2.msra.mxu0 0.0
        %1101 = vmatprep.subr.mxu0 0.0
        %1102 = vmatpush2.msra.mxu0 0.0
        %1103 = vmatprep.subr.mxu0 0.0
        %1104 = vmatpush2.msra.mxu0 0.0
        %1105 = vmatprep.subr.mxu0 0.0
        %1106 = vmatpush2.msra.mxu0 0.0
        %1107 = vmatprep.subr.mxu0 0.0
        %1108 = vmatpush2.msra.mxu0 0.0
        %1109 = vmatprep.subr.mxu0 0.0
        %1110 = vmatpush2.msra.mxu0 0.0
        %1111 = vmatprep.subr.mxu0 0.0
        %1112 = vmatpush2.msra.mxu0 0.0
        %1113 = vmatprep.subr.mxu0 0.0
        %1114 = vmatpush2.msra.mxu0 0.0
        %1115 = vmatprep.subr.mxu0 0.0
        %1116 = vmatpush2.msra.mxu0 0.0
        %1117 = vmatprep.subr.mxu0 0.0
        %1118 = vmatpush2.msra.mxu0 0.0
        %1119 = vmatprep.subr.mxu0 0.0
        %1120 = vmatpush2.msra.mxu0 0.0
        %1121 = vmatprep.subr.mxu0 0.0
        %1122 = vmatpush2.msra.mxu0 0.0
        %1123 = vmatprep.subr.mxu0 0.0
        %1124 = vmatpush2.msra.mxu0 0.0
        %1125 = vmatprep.subr.mxu0 0.0
        %1126 = vmatpush2.msra.mxu0 0.0
        %1127 = vmatprep.subr.mxu0 0.0
        %1128 = vmatpush2.msra.mxu0 0.0
        %1129 = vmatprep.mubr.f32.mxu0 0.0
        %1130 = vmatmul.mubr.f32.gmra.mxu0 %v993
        %v1131 = vpop.f32.mrf.mxu0
        %v1132 = vadd.f32 %v990, %v1131
        %v1133 = vpop.f32.mrf.mxu0
        %1134 = vdwg.mxu0
        %v1135 = vmax.f32 %v1062, 0.0
        %v1136 = vmax.f32 %v1132, 0.0
        %v1137 = vld [vmem:[%s10] sm:$0xff]
        %v1138 = vld [vmem:[%s11] sm:$0xff]
        %1140 = vrot.lane.b32.xlu0 %v1136, 1
        %v1141 = vpop.permute.xlu0 %1140
        %v1143 = vsel %vm635, %v1136, %v1141
        %v1144 = vsel %vm638, %v1135, %v1143
        %1146 = vrot.lane.b32.xlu0 %v1135, 127
        %v1147 = vpop.permute.xlu0 %1146
        %v1149 = vsel %vm643, %v1147, %v1135
        %v1150 = vsel %vm646, %v1136, %v1149
        %1152 = vset.pattern.permute.xlu0 0
        %1153 = vperm.xlu0 %1152, %v1138
        %v1154 = vpop.permute.xlu0 %1153
        %v1157 = vsel %vm827, %v1137, 0
        %1159 = vmatprep.subr.mxu0 0.0
        %1160 = vmatpush1.msra.mxu0 0.0
        %1161 = vmatprep.subr.mxu0 0.0
        %1162 = vmatpush1.msra.mxu0 0.0
        %1163 = vmatprep.subr.mxu0 0.0
        %1164 = vmatpush1.msra.mxu0 0.0
        %1165 = vmatprep.subr.mxu0 0.0
        %1166 = vmatpush1.msra.mxu0 0.0
        %1167 = vmatprep.subr.mxu0 0.0
        %1168 = vmatpush1.msra.mxu0 0.0
        %1169 = vmatprep.subr.mxu0 0.0
        %1170 = vmatpush1.msra.mxu0 0.0
        %1171 = vmatprep.subr.mxu0 0.0
        %1172 = vmatpush1.msra.mxu0 0.0
        %1173 = vmatprep.subr.mxu0 0.0
        %1174 = vmatpush1.msra.mxu0 0.0
        %1175 = vmatprep.subr.mxu0 0.0
        %1176 = vmatpush1.msra.mxu0 0.0
        %1177 = vmatprep.subr.mxu0 0.0
        %1178 = vmatpush1.msra.mxu0 0.0
        %1179 = vmatprep.subr.mxu0 0.0
        %1180 = vmatpush1.msra.mxu0 0.0
        %1181 = vmatprep.subr.mxu0 0.0
        %1182 = vmatpush1.msra.mxu0 0.0
        %1183 = vmatprep.subr.mxu0 0.0
        %1184 = vmatpush1.msra.mxu0 0.0
        %1185 = vmatprep.subr.mxu0 0.0
        %1186 = vmatpush1.msra.mxu0 %v1136
        %1187 = vmatprep.subr.mxu0 0.0
        %1188 = vmatpush1.msra.mxu0 %v1135
        %1189 = vmatprep.subr.mxu0 0.0
        %1190 = vmatpush1.msra.mxu0 %v1144
        %1191 = vmatprep.subr.mxu0 0.0
        %1192 = vmatpush2.msra.mxu0 0.0
        %1193 = vmatprep.subr.mxu0 0.0
        %1194 = vmatpush2.msra.mxu0 0.0
        %1195 = vmatprep.subr.mxu0 0.0
        %1196 = vmatpush2.msra.mxu0 0.0
        %1197 = vmatprep.subr.mxu0 0.0
        %1198 = vmatpush2.msra.mxu0 0.0
        %1199 = vmatprep.subr.mxu0 0.0
        %1200 = vmatpush2.msra.mxu0 0.0
        %1201 = vmatprep.subr.mxu0 0.0
        %1202 = vmatpush2.msra.mxu0 0.0
        %1203 = vmatprep.subr.mxu0 0.0
        %1204 = vmatpush2.msra.mxu0 0.0
        %1205 = vmatprep.subr.mxu0 0.0
        %1206 = vmatpush2.msra.mxu0 0.0
        %1207 = vmatprep.subr.mxu0 0.0
        %1208 = vmatpush2.msra.mxu0 0.0
        %1209 = vmatprep.subr.mxu0 0.0
        %1210 = vmatpush2.msra.mxu0 0.0
        %1211 = vmatprep.subr.mxu0 0.0
        %1212 = vmatpush2.msra.mxu0 0.0
        %1213 = vmatprep.subr.mxu0 0.0
        %1214 = vmatpush2.msra.mxu0 0.0
        %1215 = vmatprep.subr.mxu0 0.0
        %1216 = vmatpush2.msra.mxu0 0.0
        %1217 = vmatprep.subr.mxu0 0.0
        %1218 = vmatpush2.msra.mxu0 0.0
        %1219 = vmatprep.subr.mxu0 0.0
        %1220 = vmatpush2.msra.mxu0 0.0
        %1221 = vmatprep.subr.mxu0 0.0
        %1222 = vmatpush2.msra.mxu0 0.0
        %1223 = vmatprep.mubr.f32.mxu0 0.0
        %1224 = vmatmul.mubr.f32.gmra.mxu0 %v1157
        %v1225 = vpop.f32.mrf.mxu0
        %v1226 = vadd.f32 %v1154, %v1225
        %v1227 = vpop.f32.mrf.mxu0
        %1228 = vdwg.mxu0
        %1229 = vmatprep.subr.mxu0 0.0
        %1230 = vmatpush1.msra.mxu0 0.0
        %1231 = vmatprep.subr.mxu0 0.0
        %1232 = vmatpush1.msra.mxu0 0.0
        %1233 = vmatprep.subr.mxu0 0.0
        %1234 = vmatpush1.msra.mxu0 0.0
        %1235 = vmatprep.subr.mxu0 0.0
        %1236 = vmatpush1.msra.mxu0 0.0
        %1237 = vmatprep.subr.mxu0 0.0
        %1238 = vmatpush1.msra.mxu0 0.0
        %1239 = vmatprep.subr.mxu0 0.0
        %1240 = vmatpush1.msra.mxu0 0.0
        %1241 = vmatprep.subr.mxu0 0.0
        %1242 = vmatpush1.msra.mxu0 0.0
        %1243 = vmatprep.subr.mxu0 0.0
        %1244 = vmatpush1.msra.mxu0 0.0
        %1245 = vmatprep.subr.mxu0 0.0
        %1246 = vmatpush1.msra.mxu0 0.0
        %1247 = vmatprep.subr.mxu0 0.0
        %1248 = vmatpush1.msra.mxu0 0.0
        %1249 = vmatprep.subr.mxu0 0.0
        %1250 = vmatpush1.msra.mxu0 0.0
        %1251 = vmatprep.subr.mxu0 0.0
        %1252 = vmatpush1.msra.mxu0 0.0
        %1253 = vmatprep.subr.mxu0 0.0
        %1254 = vmatpush1.msra.mxu0 0.0
        %1255 = vmatprep.subr.mxu0 0.0
        %1256 = vmatpush1.msra.mxu0 %v1150
        %1257 = vmatprep.subr.mxu0 0.0
        %1258 = vmatpush1.msra.mxu0 %v1136
        %1259 = vmatprep.subr.mxu0 0.0
        %1260 = vmatpush1.msra.mxu0 %v1135
        %1261 = vmatprep.subr.mxu0 0.0
        %1262 = vmatpush2.msra.mxu0 0.0
        %1263 = vmatprep.subr.mxu0 0.0
        %1264 = vmatpush2.msra.mxu0 0.0
        %1265 = vmatprep.subr.mxu0 0.0
        %1266 = vmatpush2.msra.mxu0 0.0
        %1267 = vmatprep.subr.mxu0 0.0
        %1268 = vmatpush2.msra.mxu0 0.0
        %1269 = vmatprep.subr.mxu0 0.0
        %1270 = vmatpush2.msra.mxu0 0.0
        %1271 = vmatprep.subr.mxu0 0.0
        %1272 = vmatpush2.msra.mxu0 0.0
        %1273 = vmatprep.subr.mxu0 0.0
        %1274 = vmatpush2.msra.mxu0 0.0
        %1275 = vmatprep.subr.mxu0 0.0
        %1276 = vmatpush2.msra.mxu0 0.0
        %1277 = vmatprep.subr.mxu0 0.0
        %1278 = vmatpush2.msra.mxu0 0.0
        %1279 = vmatprep.subr.mxu0 0.0
        %1280 = vmatpush2.msra.mxu0 0.0
        %1281 = vmatprep.subr.mxu0 0.0
        %1282 = vmatpush2.msra.mxu0 0.0
        %1283 = vmatprep.subr.mxu0 0.0
        %1284 = vmatpush2.msra.mxu0 0.0
        %1285 = vmatprep.subr.mxu0 0.0
        %1286 = vmatpush2.msra.mxu0 0.0
        %1287 = vmatprep.subr.mxu0 0.0
        %1288 = vmatpush2.msra.mxu0 0.0
        %1289 = vmatprep.subr.mxu0 0.0
        %1290 = vmatpush2.msra.mxu0 0.0
        %1291 = vmatprep.subr.mxu0 0.0
        %1292 = vmatpush2.msra.mxu0 0.0
        %1293 = vmatprep.mubr.f32.mxu0 0.0
        %1294 = vmatmul.mubr.f32.gmra.mxu0 %v1157
        %v1295 = vpop.f32.mrf.mxu0
        %v1296 = vadd.f32 %v1154, %v1295
        %v1297 = vpop.f32.mrf.mxu0
        %1298 = vdwg.mxu0
        %v1299 = vadd.f32 %v1226, %v554
        %v1300 = vmax.f32 %v1299, 0.0
        %v1301 = vadd.f32 %v1296, %v627
        %v1302 = vmax.f32 %v1301, 0.0
        %v1303 = vmax.f32 %v1300, %v1302
        %1305 = vrot.lane.b32.xlu0 %v1303, 126
        %v1306 = vpop.permute.xlu0 %1305
        %vm1308 = vcmask 64512
        %1309 = vst.msk [vmem:[%s447] sm:$0xff] %vm1308, %v1306
        %s1310 = sand.u32 %s314, 1
        %s1311 = scalar_lea.sflag [#allocation3], %s1310
        %s1312 = sand.u32 %s314, 1
        %s1313 = smul.addr %s1312, 8
        %s1314 = scalar_lea.vmem [#allocation2], %s1313
        // Predicated region
        $region69: #{tpu_custom_call.1} parent=67 // pred_check
          %p1315 = pneg %p324
        $region70: #{tpu_custom_call.1} parent=67 // pred_check_branch
          %1317 = sbr.rel (%p1315) target = $region72
        $region71: #{tpu_custom_call.1} parent=67 // pred_region
          %s1319 = ssub.s32 128, 128
          %1320 = vsyncadd %s1311, %s1319
          %s1321 = sadd.s32 %s31, %s30
          %s1322 = smul.addr %s1321, 128
          %s1323 = scalar_lea.hbm %s12, %s1322
          %s1325 = sshll.u32 %s1314, 4
          %s1326 = int_to_ptr.vmem [resolvable:$true] %s1325
          %1328 = dma.vmem_to_hbm [thread:$0]  %s1326, 128, %s1323, %s1311
        $region72: #{tpu_custom_call.1} parent=67 // pred_fallthru
          _
      $region68: #{tpu_custom_call.1} parent=5 // pred_fallthru
        _
      %p1329 = scmp.le.s32.totalorder 2, %s21
      // Predicated region
      $region73: #{tpu_custom_call.1} parent=5 // pred_check
        %p1330 = pneg %p1329
      $region74: #{tpu_custom_call.1} parent=5 // pred_check_branch
        %1332 = sbr.rel (%p1330) target = $region76
      $region75: #{tpu_custom_call.1} parent=5 // pred_region
        %s1333 = ssub.s32 %s21, 2
        // Predicated region
        $region77: #{tpu_custom_call.1} parent=75 // pred_check
          %p1334 = pneg %p330
        $region78: #{tpu_custom_call.1} parent=75 // pred_check_branch
          %1336 = sbr.rel (%p1334) target = $region80
        $region79: #{tpu_custom_call.1} parent=75 // pred_region
          %s1337 = sand.u32 %s315, 1
          %s1338 = scalar_lea.sflag [#allocation3], %s1337
          %s1339 = sand.u32 %s315, 1
          %s1340 = smul.addr %s1339, 8
          %s1341 = scalar_lea.vmem [#allocation2], %s1340
          %1342 = dma.done %s1338, 128
        $region80: #{tpu_custom_call.1} parent=75 // pred_fallthru
          _
      $region76: #{tpu_custom_call.1} parent=5 // pred_fallthru
        _
    $region6: #{tpu_custom_call.1} parent=1 // loop_footer
      %s25 = sadd.s32 1, %s21
    $region7: #{tpu_custom_call.1} parent=1 // loop_footer_branch
      %20 = sbr.rel target = $region3
    $region8: #{tpu_custom_call.1} parent=1 // loop_exit
      _
    %1343 = vsyncpa [#allocation3], 1
    %s1344 = scalar_lea.sflag [#allocation3], 1
    %1345 = vsyncpa %s1344, 1

</llo_original>
